<compile_context>
chip_gen: v7x
topology: tpu7x:2x2x1
jax: 0.10.0
libtpu: 0.0.40
codegen_flags: <defaults>
</compile_context>

<pallas_src>
import numpy as np
import jax
import jax.numpy as jnp
from jax.experimental import pallas as pl
from jax.experimental.pallas import tpu as pltpu

# ----- architecture constants (small shapes consistent with the module) -----
T = 8              # times (sequence length)
F = 32             # features (embedding dim)
TF = T * F         # 256 -- flattened (time, feature) width, lane-dense
DENSE_DIM = 64     # intermediate_size of FourierEncoder dense_proj
HID = T * DENSE_DIM  # 512
DENSE_SIZE = 32    # dense_size of the classifier dense layer
C = 3              # len(target_levels)
OUT_PAD = 128      # lane-padded output width (valid probs in [:, :C])
EPS = 1e-5         # LayerNorm_with_Mask eps
NEG_BIG = -1e30    # bias for padded logit lanes (softmax ignores them)


def _round_up(n, m):
    return ((n + m - 1) // m) * m


def _gelu_exact(x):
    # matches torch.nn.GELU() (erf form)
    return 0.5 * x * (1.0 + jax.lax.erf(x * 0.7071067811865476))


def _masked_layernorm_flat(xf, seg, gamma_f, beta_f):
    # Exact reproduction of LayerNorm_with_Mask_PT, vectorized over the batch
    # block, in the flat (BB, T*F) layout.
    #   xf:      (BB, T*F)
    #   seg:     (T*F, T*F) block-diag of ones -> per-time-step feature sums,
    #            broadcast back over the F lanes of each time step.
    #   gamma_f, beta_f: (1, T*F) = gamma/beta tiled over T.
    # The padding mask is recomputed from THIS layer's own input
    # (sum over features == 0), exactly as the torch code does.
    row_sum = jnp.dot(xf, seg, preferred_element_type=jnp.float32)
    keep = (row_sum != 0.0).astype(jnp.float32)                 # (BB, T*F)
    n_elem = jnp.sum(keep, axis=-1, keepdims=True)              # (#kept rows)*F
    mean = jnp.sum(xf, axis=-1, keepdims=True) / n_elem         # (BB, 1)
    xc = xf - mean
    var = jnp.square(xc * keep)                                 # element-wise, as in torch
    return keep * xc / jnp.sqrt(var + EPS) * gamma_f + beta_f


def classifier_kernel(x_ref, vecs_ref, c1f_ref, head_ref, seg_ref, wdft_ref,
                      w1b_ref, w2b_ref, wdt_ref, wop_ref, out_ref):
    xf = x_ref[...]                  # (BB, T*F)
    seg = seg_ref[...]               # (T*F, T*F)

    vecs = vecs_ref[...]             # (8, T*F) packed small params
    pos_f = vecs[0:1]                # flattened positional embedding rows 1..T
    g0, b0 = vecs[1:2], vecs[2:3]    # normalizaion_layer gamma/beta (tiled)
    g1, b1 = vecs[3:4], vecs[4:5]    # encoder layernorm_1
    g2, b2 = vecs[5:6], vecs[6:7]    # encoder layernorm_2
    c2f = vecs[7:8]                  # dense_proj second bias (tiled)

    head = head_ref[...]             # (2, 128)
    cd = head[0:1]                   # dense_1 bias (lanes >= DENSE_SIZE are 0)
    co = head[1:2]                   # output bias (lanes >= C hold -1e30)

    # --- AddPositionalEmbedding_PT (padding_idx rows contribute 0) ---
    keep0 = (jnp.dot(xf, seg, preferred_element_type=jnp.float32) != 0.0)
    xp = xf + pos_f * keep0.astype(jnp.float32)

    # --- normalizaion_layer (LayerNorm_with_Mask_PT) ---
    xn = _masked_layernorm_flat(xp, seg, g0, b0)

    # --- FourierEncoder_PT ---
    # Re(fft2(x)) fused into one (T*F, T*F) linear operator -> single MXU pass
    att = jnp.dot(xn, wdft_ref[...], preferred_element_type=jnp.float32)
    # encoder dropout is identity in eval mode
    proj_in = _masked_layernorm_flat(att, seg, g1, b1)
    # dense_proj (Linear F->DENSE_DIM, GELU, Linear DENSE_DIM->F) applied per
    # time step via block-diagonal weights (no in-kernel reshape needed).
    h = _gelu_exact(jnp.dot(proj_in, w1b_ref[...],
                            preferred_element_type=jnp.float32) + c1f_ref[...])
    proj_out = jnp.dot(h, w2b_ref[...],
                       preferred_element_type=jnp.float32) + c2f
    enc = _masked_layernorm_flat(proj_in + proj_out, seg, g2, b2)

    # --- GlobalAveragePooling1D_PT (no mask argument; length from own input) ---
    nz = (jnp.dot(enc, seg, preferred_element_type=jnp.float32) != 0.0)
    length = jnp.sum(nz.astype(jnp.float32), axis=-1, keepdims=True) * (1.0 / F)
    # enc @ tile(wd) == (sum_t enc) @ wd  -> fuses the time-sum with dense_1
    summed = jnp.dot(enc, wdt_ref[...], preferred_element_type=jnp.float32)

    # --- dense_1 + GELU ---
    d = _gelu_exact(summed / length + cd)          # (BB, 128), lanes >=32 are 0

    # --- output_categories + Softmax(dim=1) (padded lanes get exp(-1e30)=0) ---
    logits = jnp.dot(d, wop_ref[...], preferred_element_type=jnp.float32) + co
    logits = logits - jnp.max(logits, axis=-1, keepdims=True)
    e = jnp.exp(logits)
    out_ref[...] = e / jnp.sum(e, axis=-1, keepdims=True)


def text_embedding_classifier(x, params, block_b=256):
    """x: (B, T, F) float32 -> (B, C) probabilities."""
    B = x.shape[0]
    BB = min(block_b, _round_up(B, 8))       # batch block (multiple of 8)
    B_pad = _round_up(B, BB)

    xf = x.reshape(B, TF)
    if B_pad != B:
        # edge-replicate so padded rows stay numerically benign (sliced away)
        xf = jnp.pad(xf, ((0, B_pad - B), (0, 0)), mode="edge")

    weights = (params["vecs"], params["c1f"], params["head"], params["seg"],
               params["wdft"], params["w1b"], params["w2b"],
               params["wdt"], params["wop"])

    in_specs = [pl.BlockSpec((BB, TF), lambda i: (i, 0))]
    in_specs += [pl.BlockSpec(w.shape, lambda i: (0, 0)) for w in weights]
    out_spec = pl.BlockSpec((BB, OUT_PAD), lambda i: (i, 0))

    probs_pad = pl.pallas_call(
        classifier_kernel,
        out_shape=jax.ShapeDtypeStruct((B_pad, OUT_PAD), jnp.float32),
        grid=(B_pad // BB,),
        in_specs=in_specs,
        out_specs=out_spec,
        compiler_params=pltpu.CompilerParams(dimension_semantics=("parallel",)),
    )(xf, *weights)

    return probs_pad[:B, :C]


def init_params(key):
    ks = jax.random.split(key, 7)

    # positional embedding table (T+1, F), padding_idx=0 row is zero
    emb = np.array(jax.random.normal(ks[0], (T + 1, F), jnp.float32)) * 0.1
    emb[0] = 0.0
    pos_flat = emb[1:].reshape(1, TF)

    # LayerNorm params (torch init gamma=1, beta=0), tiled over T
    gamma = np.ones((1, F), np.float32)
    beta = np.zeros((1, F), np.float32)
    g_f = np.tile(gamma, (1, T))
    b_f = np.tile(beta, (1, T))

    # encoder dense_proj: Linear(F->DENSE_DIM), GELU, Linear(DENSE_DIM->F)
    w1 = np.array(jax.random.normal(ks[1], (F, DENSE_DIM), jnp.float32)) * 0.05
    c1 = np.array(jax.random.normal(ks[2], (1, DENSE_DIM), jnp.float32)) * 0.05
    w2 = np.array(jax.random.normal(ks[3], (DENSE_DIM, F), jnp.float32)) * 0.05
    c2 = np.array(jax.random.normal(ks[4], (1, F), jnp.float32)) * 0.05
    # dense_1: Linear(F->DENSE_SIZE); output_categories: Linear(DENSE_SIZE->C)
    wd = np.array(jax.random.normal(ks[5], (F, DENSE_SIZE), jnp.float32)) * 0.05
    cd = np.zeros((1, DENSE_SIZE), np.float32)
    wo = np.array(jax.random.normal(ks[6], (DENSE_SIZE, C), jnp.float32)) * 0.05
    co = np.zeros((1, C), np.float32)

    # --- fused / packed operators (host-side precompute) ---
    # Re(fft2) operator: W[(t,f),(p,q)] = cos(2pi tp/T)cos(2pi fq/F)
    #                                    - sin(2pi tp/T)sin(2pi fq/F)
    tt = np.arange(T)
    ff = np.arange(F)
    cT = np.cos(2 * np.pi * np.outer(tt, tt) / T).astype(np.float32)
    sT = np.sin(2 * np.pi * np.outer(tt, tt) / T).astype(np.float32)
    cF = np.cos(2 * np.pi * np.outer(ff, ff) / F).astype(np.float32)
    sF = np.sin(2 * np.pi * np.outer(ff, ff) / F).astype(np.float32)
    wdft = (np.einsum('tp,fq->tfpq', cT, cF)
            - np.einsum('tp,fq->tfpq', sT, sF)).reshape(TF, TF).astype(np.float32)

    # segment-sum operator: per-time-step sum over F, broadcast over F lanes
    seg = np.kron(np.eye(T, dtype=np.float32), np.ones((F, F), np.float32))

    # per-time-step linears as block-diagonal matmuls
    w1b = np.kron(np.eye(T, dtype=np.float32), w1)        # (TF, HID)
    w2b = np.kron(np.eye(T, dtype=np.float32), w2)        # (HID, TF)
    c1f = np.tile(c1, (1, T))                             # (1, HID)
    c2f = np.tile(c2, (1, T))                             # (1, TF)

    # packed small (1, TF) rows: pos, g0, b0, g1, b1, g2, b2, c2
    vecs = np.concatenate([pos_flat, g_f, b_f, g_f, b_f, g_f, b_f, c2f], axis=0)

    # pooling fused with dense_1 weights: enc @ tile(wd) == (sum_t enc) @ wd,
    # lane-padded to 128 columns
    wdt = np.zeros((TF, OUT_PAD), np.float32)
    wdt[:, :DENSE_SIZE] = np.tile(wd, (T, 1))

    # output head padded to 128 lanes; padded bias lanes get -1e30 so softmax
    # over the padded tile equals softmax over the C real logits
    wop = np.zeros((OUT_PAD, OUT_PAD), np.float32)
    wop[:DENSE_SIZE, :C] = wo
    head = np.zeros((2, OUT_PAD), np.float32)
    head[0, :DENSE_SIZE] = cd[0]
    head[1, :] = NEG_BIG
    head[1, :C] = co[0]

    return dict(
        vecs=jnp.asarray(vecs), c1f=jnp.asarray(c1f), head=jnp.asarray(head),
        seg=jnp.asarray(seg), wdft=jnp.asarray(wdft),
        w1b=jnp.asarray(w1b), w2b=jnp.asarray(w2b),
        wdt=jnp.asarray(wdt), wop=jnp.asarray(wop),
    )

# TODO(synk): rec_type='gru'/'lstm' branches (packed recurrent layers) and the
# 'multihead' attention encoder are not implemented; this kernel realizes the
# rec_layers=0 / fourier-encoder path of TextEmbeddingClassifier_PT.

if __name__ == "__main__":
    key = jax.random.PRNGKey(0)
    k_x, k_p = jax.random.split(key)

    B = 2
    x = jax.random.normal(k_x, (B, T, F), jnp.float32)
    # simulate padded time steps on the second batch element (exercises masks)
    x = x.at[1, T // 2:, :].set(0.0)

    params = init_params(k_p)
    probs = text_embedding_classifier(x, params)
    probs = jax.block_until_ready(probs)

    assert probs.shape == (B, C)
    assert bool(jnp.all(jnp.isfinite(probs)))
    assert bool(jnp.allclose(jnp.sum(probs, axis=1), 1.0, atol=1e-5))
    print("KERNEL_OK")
</pallas_src>

<mosaic_0001>
module attributes {stable_mosaic.version = 11 : i64} {
  func.func @classifier_kernel(%arg0: i32, %arg1: memref<8x256xf32, #tpu.memory_space<vmem>>, %arg2: memref<8x256xf32, #tpu.memory_space<vmem>>, %arg3: memref<1x512xf32, #tpu.memory_space<vmem>>, %arg4: memref<2x128xf32, #tpu.memory_space<vmem>>, %arg5: memref<256x256xf32, #tpu.memory_space<vmem>>, %arg6: memref<256x256xf32, #tpu.memory_space<vmem>>, %arg7: memref<256x512xf32, #tpu.memory_space<vmem>>, %arg8: memref<512x256xf32, #tpu.memory_space<vmem>>, %arg9: memref<256x128xf32, #tpu.memory_space<vmem>>, %arg10: memref<128x128xf32, #tpu.memory_space<vmem>>, %arg11: memref<8x128xf32, #tpu.memory_space<vmem>>) attributes {dimension_semantics = [#tpu.dimension_semantics<parallel>], iteration_bounds = array<i64: 1>, scalar_prefetch = 0 : i64, scratch_operands = 0 : i64, tpu.core_type = #tpu.core_type<tc>, window_params = [{transform_indices = @transform_0, window_bounds = array<i64: 8, 256>}, {pipeline_mode = #tpu.pipeline_mode<synchronous>, transform_indices = @transform_1, window_bounds = array<i64: 8, 256>}, {pipeline_mode = #tpu.pipeline_mode<synchronous>, transform_indices = @transform_2, window_bounds = array<i64: 1, 512>}, {pipeline_mode = #tpu.pipeline_mode<synchronous>, transform_indices = @transform_3, window_bounds = array<i64: 2, 128>}, {pipeline_mode = #tpu.pipeline_mode<synchronous>, transform_indices = @transform_4, window_bounds = array<i64: 256, 256>}, {pipeline_mode = #tpu.pipeline_mode<synchronous>, transform_indices = @transform_5, window_bounds = array<i64: 256, 256>}, {pipeline_mode = #tpu.pipeline_mode<synchronous>, transform_indices = @transform_6, window_bounds = array<i64: 256, 512>}, {pipeline_mode = #tpu.pipeline_mode<synchronous>, transform_indices = @transform_7, window_bounds = array<i64: 512, 256>}, {pipeline_mode = #tpu.pipeline_mode<synchronous>, transform_indices = @transform_8, window_bounds = array<i64: 256, 128>}, {pipeline_mode = #tpu.pipeline_mode<synchronous>, transform_indices = @transform_9, window_bounds = array<i64: 128, 128>}, {transform_indices = @transform_10, window_bounds = array<i64: 8, 128>}]} {
    %c0 = arith.constant 0 : index
    %c0_0 = arith.constant 0 : index
    %0 = vector.load %arg1[%c0, %c0_0] : memref<8x256xf32, #tpu.memory_space<vmem>>, vector<8x256xf32>
    %c0_1 = arith.constant 0 : index
    %c0_2 = arith.constant 0 : index
    %1 = vector.load %arg5[%c0_1, %c0_2] : memref<256x256xf32, #tpu.memory_space<vmem>>, vector<256x256xf32>
    %c0_3 = arith.constant 0 : index
    %c0_4 = arith.constant 0 : index
    %2 = vector.load %arg2[%c0_3, %c0_4] : memref<8x256xf32, #tpu.memory_space<vmem>>, vector<8x256xf32>
    %3 = vector.extract_strided_slice %2 {offsets = [0, 0], sizes = [1, 256], strides = [1, 1]} : vector<8x256xf32> to vector<1x256xf32>
    %4 = vector.extract_strided_slice %2 {offsets = [1, 0], sizes = [1, 256], strides = [1, 1]} : vector<8x256xf32> to vector<1x256xf32>
    %5 = vector.extract_strided_slice %2 {offsets = [2, 0], sizes = [1, 256], strides = [1, 1]} : vector<8x256xf32> to vector<1x256xf32>
    %6 = vector.extract_strided_slice %2 {offsets = [3, 0], sizes = [1, 256], strides = [1, 1]} : vector<8x256xf32> to vector<1x256xf32>
    %7 = vector.extract_strided_slice %2 {offsets = [4, 0], sizes = [1, 256], strides = [1, 1]} : vector<8x256xf32> to vector<1x256xf32>
    %8 = vector.extract_strided_slice %2 {offsets = [5, 0], sizes = [1, 256], strides = [1, 1]} : vector<8x256xf32> to vector<1x256xf32>
    %9 = vector.extract_strided_slice %2 {offsets = [6, 0], sizes = [1, 256], strides = [1, 1]} : vector<8x256xf32> to vector<1x256xf32>
    %10 = vector.extract_strided_slice %2 {offsets = [7, 0], sizes = [1, 256], strides = [1, 1]} : vector<8x256xf32> to vector<1x256xf32>
    %c0_5 = arith.constant 0 : index
    %c0_6 = arith.constant 0 : index
    %11 = vector.load %arg4[%c0_5, %c0_6] : memref<2x128xf32, #tpu.memory_space<vmem>>, vector<2x128xf32>
    %12 = vector.extract_strided_slice %11 {offsets = [0, 0], sizes = [1, 128], strides = [1, 1]} : vector<2x128xf32> to vector<1x128xf32>
    %13 = vector.extract_strided_slice %11 {offsets = [1, 0], sizes = [1, 128], strides = [1, 1]} : vector<2x128xf32> to vector<1x128xf32>
    %cst = arith.constant dense<0.000000e+00> : vector<8x256xf32>
    %14 = tpu.matmul %0, %1, %cst {dimension_numbers = #tpu.dot_dimension_numbers<[1], [0], [0], [1], [0, 0, 1, 1], [], []>} : vector<8x256xf32>, vector<256x256xf32>, vector<8x256xf32> -> vector<8x256xf32>
    %cst_7 = arith.constant 0.000000e+00 : f32
    %15 = vector.broadcast %cst_7 : f32 to vector<8x256xf32>
    %16 = arith.cmpf one, %14, %15 : vector<8x256xf32>
    %17 = arith.extui %16 : vector<8x256xi1> to vector<8x256xi32>
    %18 = arith.sitofp %17 : vector<8x256xi32> to vector<8x256xf32>
    %19 = vector.broadcast %3 : vector<1x256xf32> to vector<8x256xf32>
    %20 = arith.mulf %19, %18 : vector<8x256xf32>
    %21 = arith.addf %0, %20 : vector<8x256xf32>
    %cst_8 = arith.constant dense<0.000000e+00> : vector<8x256xf32>
    %22 = tpu.matmul %21, %1, %cst_8 {dimension_numbers = #tpu.dot_dimension_numbers<[1], [0], [0], [1], [0, 0, 1, 1], [], []>} : vector<8x256xf32>, vector<256x256xf32>, vector<8x256xf32> -> vector<8x256xf32>
    %cst_9 = arith.constant 0.000000e+00 : f32
    %23 = vector.broadcast %cst_9 : f32 to vector<8x256xf32>
    %24 = arith.cmpf one, %22, %23 : vector<8x256xf32>
    %25 = arith.extui %24 : vector<8x256xi1> to vector<8x256xi32>
    %26 = arith.sitofp %25 : vector<8x256xi32> to vector<8x256xf32>
    %cst_10 = arith.constant dense<0.000000e+00> : vector<8xf32>
    %27 = vector.multi_reduction <add>, %26, %cst_10 [1] : vector<8x256xf32> to vector<8xf32>
    %28 = vector.shape_cast %27 : vector<8xf32> to vector<8x1xf32>
    %cst_11 = arith.constant dense<0.000000e+00> : vector<8xf32>
    %29 = vector.multi_reduction <add>, %21, %cst_11 [1] : vector<8x256xf32> to vector<8xf32>
    %30 = vector.shape_cast %29 : vector<8xf32> to vector<8x1xf32>
    %31 = arith.divf %30, %28 : vector<8x1xf32>
    %32 = vector.broadcast %31 : vector<8x1xf32> to vector<8x256xf32>
    %33 = arith.subf %21, %32 : vector<8x256xf32>
    %34 = arith.mulf %33, %26 : vector<8x256xf32>
    %35 = arith.mulf %34, %34 : vector<8x256xf32>
    %36 = arith.mulf %26, %33 : vector<8x256xf32>
    %cst_12 = arith.constant 9.99999974E-6 : f32
    %37 = vector.broadcast %cst_12 : f32 to vector<8x256xf32>
    %38 = arith.addf %35, %37 : vector<8x256xf32>
    %39 = math.sqrt %38 : vector<8x256xf32>
    %40 = arith.divf %36, %39 : vector<8x256xf32>
    %41 = vector.broadcast %4 : vector<1x256xf32> to vector<8x256xf32>
    %42 = arith.mulf %40, %41 : vector<8x256xf32>
    %43 = vector.broadcast %5 : vector<1x256xf32> to vector<8x256xf32>
    %44 = arith.addf %42, %43 : vector<8x256xf32>
    %c0_13 = arith.constant 0 : index
    %c0_14 = arith.constant 0 : index
    %45 = vector.load %arg6[%c0_13, %c0_14] : memref<256x256xf32, #tpu.memory_space<vmem>>, vector<256x256xf32>
    %cst_15 = arith.constant dense<0.000000e+00> : vector<8x256xf32>
    %46 = tpu.matmul %44, %45, %cst_15 {dimension_numbers = #tpu.dot_dimension_numbers<[1], [0], [0], [1], [0, 0, 1, 1], [], []>} : vector<8x256xf32>, vector<256x256xf32>, vector<8x256xf32> -> vector<8x256xf32>
    %cst_16 = arith.constant dense<0.000000e+00> : vector<8x256xf32>
    %47 = tpu.matmul %46, %1, %cst_16 {dimension_numbers = #tpu.dot_dimension_numbers<[1], [0], [0], [1], [0, 0, 1, 1], [], []>} : vector<8x256xf32>, vector<256x256xf32>, vector<8x256xf32> -> vector<8x256xf32>
    %cst_17 = arith.constant 0.000000e+00 : f32
    %48 = vector.broadcast %cst_17 : f32 to vector<8x256xf32>
    %49 = arith.cmpf one, %47, %48 : vector<8x256xf32>
    %50 = arith.extui %49 : vector<8x256xi1> to vector<8x256xi32>
    %51 = arith.sitofp %50 : vector<8x256xi32> to vector<8x256xf32>
    %cst_18 = arith.constant dense<0.000000e+00> : vector<8xf32>
    %52 = vector.multi_reduction <add>, %51, %cst_18 [1] : vector<8x256xf32> to vector<8xf32>
    %53 = vector.shape_cast %52 : vector<8xf32> to vector<8x1xf32>
    %cst_19 = arith.constant dense<0.000000e+00> : vector<8xf32>
    %54 = vector.multi_reduction <add>, %46, %cst_19 [1] : vector<8x256xf32> to vector<8xf32>
    %55 = vector.shape_cast %54 : vector<8xf32> to vector<8x1xf32>
    %56 = arith.divf %55, %53 : vector<8x1xf32>
    %57 = vector.broadcast %56 : vector<8x1xf32> to vector<8x256xf32>
    %58 = arith.subf %46, %57 : vector<8x256xf32>
    %59 = arith.mulf %58, %51 : vector<8x256xf32>
    %60 = arith.mulf %59, %59 : vector<8x256xf32>
    %61 = arith.mulf %51, %58 : vector<8x256xf32>
    %cst_20 = arith.constant 9.99999974E-6 : f32
    %62 = vector.broadcast %cst_20 : f32 to vector<8x256xf32>
    %63 = arith.addf %60, %62 : vector<8x256xf32>
    %64 = math.sqrt %63 : vector<8x256xf32>
    %65 = arith.divf %61, %64 : vector<8x256xf32>
    %66 = vector.broadcast %6 : vector<1x256xf32> to vector<8x256xf32>
    %67 = arith.mulf %65, %66 : vector<8x256xf32>
    %68 = vector.broadcast %7 : vector<1x256xf32> to vector<8x256xf32>
    %69 = arith.addf %67, %68 : vector<8x256xf32>
    %c0_21 = arith.constant 0 : index
    %c0_22 = arith.constant 0 : index
    %70 = vector.load %arg7[%c0_21, %c0_22] : memref<256x512xf32, #tpu.memory_space<vmem>>, vector<256x512xf32>
    %cst_23 = arith.constant dense<0.000000e+00> : vector<8x512xf32>
    %71 = tpu.matmul %69, %70, %cst_23 {dimension_numbers = #tpu.dot_dimension_numbers<[1], [0], [0], [1], [0, 0, 1, 1], [], []>} : vector<8x256xf32>, vector<256x512xf32>, vector<8x512xf32> -> vector<8x512xf32>
    %c0_24 = arith.constant 0 : index
    %c0_25 = arith.constant 0 : index
    %72 = vector.load %arg3[%c0_24, %c0_25] : memref<1x512xf32, #tpu.memory_space<vmem>>, vector<1x512xf32>
    %73 = vector.broadcast %72 : vector<1x512xf32> to vector<8x512xf32>
    %74 = arith.addf %71, %73 : vector<8x512xf32>
    %cst_26 = arith.constant 5.000000e-01 : f32
    %75 = vector.broadcast %cst_26 : f32 to vector<8x512xf32>
    %76 = arith.mulf %75, %74 : vector<8x512xf32>
    %cst_27 = arith.constant 0.707106769 : f32
    %77 = vector.broadcast %cst_27 : f32 to vector<8x512xf32>
    %78 = arith.mulf %74, %77 : vector<8x512xf32>
    %79 = math.erf %78 : vector<8x512xf32>
    %cst_28 = arith.constant 1.000000e+00 : f32
    %80 = vector.broadcast %cst_28 : f32 to vector<8x512xf32>
    %81 = arith.addf %80, %79 : vector<8x512xf32>
    %82 = arith.mulf %76, %81 : vector<8x512xf32>
    %c0_29 = arith.constant 0 : index
    %c0_30 = arith.constant 0 : index
    %83 = vector.load %arg8[%c0_29, %c0_30] : memref<512x256xf32, #tpu.memory_space<vmem>>, vector<512x256xf32>
    %cst_31 = arith.constant dense<0.000000e+00> : vector<8x256xf32>
    %84 = tpu.matmul %82, %83, %cst_31 {dimension_numbers = #tpu.dot_dimension_numbers<[1], [0], [0], [1], [0, 0, 1, 1], [], []>} : vector<8x512xf32>, vector<512x256xf32>, vector<8x256xf32> -> vector<8x256xf32>
    %85 = vector.broadcast %10 : vector<1x256xf32> to vector<8x256xf32>
    %86 = arith.addf %84, %85 : vector<8x256xf32>
    %87 = arith.addf %69, %86 : vector<8x256xf32>
    %cst_32 = arith.constant dense<0.000000e+00> : vector<8x256xf32>
    %88 = tpu.matmul %87, %1, %cst_32 {dimension_numbers = #tpu.dot_dimension_numbers<[1], [0], [0], [1], [0, 0, 1, 1], [], []>} : vector<8x256xf32>, vector<256x256xf32>, vector<8x256xf32> -> vector<8x256xf32>
    %cst_33 = arith.constant 0.000000e+00 : f32
    %89 = vector.broadcast %cst_33 : f32 to vector<8x256xf32>
    %90 = arith.cmpf one, %88, %89 : vector<8x256xf32>
    %91 = arith.extui %90 : vector<8x256xi1> to vector<8x256xi32>
    %92 = arith.sitofp %91 : vector<8x256xi32> to vector<8x256xf32>
    %cst_34 = arith.constant dense<0.000000e+00> : vector<8xf32>
    %93 = vector.multi_reduction <add>, %92, %cst_34 [1] : vector<8x256xf32> to vector<8xf32>
    %94 = vector.shape_cast %93 : vector<8xf32> to vector<8x1xf32>
    %cst_35 = arith.constant dense<0.000000e+00> : vector<8xf32>
    %95 = vector.multi_reduction <add>, %87, %cst_35 [1] : vector<8x256xf32> to vector<8xf32>
    %96 = vector.shape_cast %95 : vector<8xf32> to vector<8x1xf32>
    %97 = arith.divf %96, %94 : vector<8x1xf32>
    %98 = vector.broadcast %97 : vector<8x1xf32> to vector<8x256xf32>
    %99 = arith.subf %87, %98 : vector<8x256xf32>
    %100 = arith.mulf %99, %92 : vector<8x256xf32>
    %101 = arith.mulf %100, %100 : vector<8x256xf32>
    %102 = arith.mulf %92, %99 : vector<8x256xf32>
    %cst_36 = arith.constant 9.99999974E-6 : f32
    %103 = vector.broadcast %cst_36 : f32 to vector<8x256xf32>
    %104 = arith.addf %101, %103 : vector<8x256xf32>
    %105 = math.sqrt %104 : vector<8x256xf32>
    %106 = arith.divf %102, %105 : vector<8x256xf32>
    %107 = vector.broadcast %8 : vector<1x256xf32> to vector<8x256xf32>
    %108 = arith.mulf %106, %107 : vector<8x256xf32>
    %109 = vector.broadcast %9 : vector<1x256xf32> to vector<8x256xf32>
    %110 = arith.addf %108, %109 : vector<8x256xf32>
    %cst_37 = arith.constant dense<0.000000e+00> : vector<8x256xf32>
    %111 = tpu.matmul %110, %1, %cst_37 {dimension_numbers = #tpu.dot_dimension_numbers<[1], [0], [0], [1], [0, 0, 1, 1], [], []>} : vector<8x256xf32>, vector<256x256xf32>, vector<8x256xf32> -> vector<8x256xf32>
    %cst_38 = arith.constant 0.000000e+00 : f32
    %112 = vector.broadcast %cst_38 : f32 to vector<8x256xf32>
    %113 = arith.cmpf one, %111, %112 : vector<8x256xf32>
    %114 = arith.extui %113 : vector<8x256xi1> to vector<8x256xi32>
    %115 = arith.sitofp %114 : vector<8x256xi32> to vector<8x256xf32>
    %cst_39 = arith.constant dense<0.000000e+00> : vector<8xf32>
    %116 = vector.multi_reduction <add>, %115, %cst_39 [1] : vector<8x256xf32> to vector<8xf32>
    %117 = vector.shape_cast %116 : vector<8xf32> to vector<8x1xf32>
    %cst_40 = arith.constant 3.125000e-02 : f32
    %118 = vector.broadcast %cst_40 : f32 to vector<8x1xf32>
    %119 = arith.mulf %117, %118 : vector<8x1xf32>
    %c0_41 = arith.constant 0 : index
    %c0_42 = arith.constant 0 : index
    %120 = vector.load %arg9[%c0_41, %c0_42] : memref<256x128xf32, #tpu.memory_space<vmem>>, vector<256x128xf32>
    %cst_43 = arith.constant dense<0.000000e+00> : vector<8x128xf32>
    %121 = tpu.matmul %110, %120, %cst_43 {dimension_numbers = #tpu.dot_dimension_numbers<[1], [0], [0], [1], [0, 0, 1, 1], [], []>} : vector<8x256xf32>, vector<256x128xf32>, vector<8x128xf32> -> vector<8x128xf32>
    %122 = vector.broadcast %119 : vector<8x1xf32> to vector<8x128xf32>
    %123 = arith.divf %121, %122 : vector<8x128xf32>
    %124 = vector.broadcast %12 : vector<1x128xf32> to vector<8x128xf32>
    %125 = arith.addf %123, %124 : vector<8x128xf32>
    %cst_44 = arith.constant 5.000000e-01 : f32
    %126 = vector.broadcast %cst_44 : f32 to vector<8x128xf32>
    %127 = arith.mulf %126, %125 : vector<8x128xf32>
    %cst_45 = arith.constant 0.707106769 : f32
    %128 = vector.broadcast %cst_45 : f32 to vector<8x128xf32>
    %129 = arith.mulf %125, %128 : vector<8x128xf32>
    %130 = math.erf %129 : vector<8x128xf32>
    %cst_46 = arith.constant 1.000000e+00 : f32
    %131 = vector.broadcast %cst_46 : f32 to vector<8x128xf32>
    %132 = arith.addf %131, %130 : vector<8x128xf32>
    %133 = arith.mulf %127, %132 : vector<8x128xf32>
    %c0_47 = arith.constant 0 : index
    %c0_48 = arith.constant 0 : index
    %134 = vector.load %arg10[%c0_47, %c0_48] : memref<128x128xf32, #tpu.memory_space<vmem>>, vector<128x128xf32>
    %cst_49 = arith.constant dense<0.000000e+00> : vector<8x128xf32>
    %135 = tpu.matmul %133, %134, %cst_49 {dimension_numbers = #tpu.dot_dimension_numbers<[1], [0], [0], [1], [0, 0, 1, 1], [], []>} : vector<8x128xf32>, vector<128x128xf32>, vector<8x128xf32> -> vector<8x128xf32>
    %136 = vector.broadcast %13 : vector<1x128xf32> to vector<8x128xf32>
    %137 = arith.addf %135, %136 : vector<8x128xf32>
    %cst_50 = arith.constant dense<0xFF800000> : vector<8xf32>
    %138 = vector.multi_reduction <maximumf>, %137, %cst_50 [1] : vector<8x128xf32> to vector<8xf32>
    %139 = vector.shape_cast %138 : vector<8xf32> to vector<8x1xf32>
    %140 = vector.broadcast %139 : vector<8x1xf32> to vector<8x128xf32>
    %141 = arith.subf %137, %140 : vector<8x128xf32>
    %142 = math.exp %141 : vector<8x128xf32>
    %cst_51 = arith.constant dense<0.000000e+00> : vector<8xf32>
    %143 = vector.multi_reduction <add>, %142, %cst_51 [1] : vector<8x128xf32> to vector<8xf32>
    %144 = vector.shape_cast %143 : vector<8xf32> to vector<8x1xf32>
    %145 = vector.broadcast %144 : vector<8x1xf32> to vector<8x128xf32>
    %146 = arith.divf %142, %145 : vector<8x128xf32>
    %c0_52 = arith.constant 0 : index
    %c0_53 = arith.constant 0 : index
    %147 = vector.load %arg11[%c0_52, %c0_53] : memref<8x128xf32, #tpu.memory_space<vmem>>, vector<8x128xf32>
    tpu.vector_store %arg11[%c0_52, %c0_53], %146 {strides = array<i32>} : memref<8x128xf32, #tpu.memory_space<vmem>>, vector<8x128xf32>,
    return
  }
  func.func @transform_0(%arg0: i32) -> (i32, i32) {
    %c0_i32 = arith.constant 0 : i32
    %c0_i32_0 = arith.constant 0 : i32
    return %arg0, %c0_i32 : i32, i32
  }
  func.func @transform_1(%arg0: i32) -> (i32, i32) {
    %c0_i32 = arith.constant 0 : i32
    %c0_i32_0 = arith.constant 0 : i32
    %c0_i32_1 = arith.constant 0 : i32
    return %c0_i32, %c0_i32_0 : i32, i32
  }
  func.func @transform_2(%arg0: i32) -> (i32, i32) {
    %c0_i32 = arith.constant 0 : i32
    %c0_i32_0 = arith.constant 0 : i32
    %c0_i32_1 = arith.constant 0 : i32
    return %c0_i32, %c0_i32_0 : i32, i32
  }
  func.func @transform_3(%arg0: i32) -> (i32, i32) {
    %c0_i32 = arith.constant 0 : i32
    %c0_i32_0 = arith.constant 0 : i32
    %c0_i32_1 = arith.constant 0 : i32
    return %c0_i32, %c0_i32_0 : i32, i32
  }
  func.func @transform_4(%arg0: i32) -> (i32, i32) {
    %c0_i32 = arith.constant 0 : i32
    %c0_i32_0 = arith.constant 0 : i32
    %c0_i32_1 = arith.constant 0 : i32
    return %c0_i32, %c0_i32_0 : i32, i32
  }
  func.func @transform_5(%arg0: i32) -> (i32, i32) {
    %c0_i32 = arith.constant 0 : i32
    %c0_i32_0 = arith.constant 0 : i32
    %c0_i32_1 = arith.constant 0 : i32
    return %c0_i32, %c0_i32_0 : i32, i32
  }
  func.func @transform_6(%arg0: i32) -> (i32, i32) {
    %c0_i32 = arith.constant 0 : i32
    %c0_i32_0 = arith.constant 0 : i32
    %c0_i32_1 = arith.constant 0 : i32
    return %c0_i32, %c0_i32_0 : i32, i32
  }
  func.func @transform_7(%arg0: i32) -> (i32, i32) {
    %c0_i32 = arith.constant 0 : i32
    %c0_i32_0 = arith.constant 0 : i32
    %c0_i32_1 = arith.constant 0 : i32
    return %c0_i32, %c0_i32_0 : i32, i32
  }
  func.func @transform_8(%arg0: i32) -> (i32, i32) {
    %c0_i32 = arith.constant 0 : i32
    %c0_i32_0 = arith.constant 0 : i32
    %c0_i32_1 = arith.constant 0 : i32
    return %c0_i32, %c0_i32_0 : i32, i32
  }
  func.func @transform_9(%arg0: i32) -> (i32, i32) {
    %c0_i32 = arith.constant 0 : i32
    %c0_i32_0 = arith.constant 0 : i32
    %c0_i32_1 = arith.constant 0 : i32
    return %c0_i32, %c0_i32_0 : i32, i32
  }
  func.func @transform_10(%arg0: i32) -> (i32, i32) {
    %c0_i32 = arith.constant 0 : i32
    %c0_i32_0 = arith.constant 0 : i32
    return %arg0, %c0_i32 : i32, i32
  }
}

</mosaic_0001>

<llo_original>
// kernel: tpu_custom_call.1
$region0: #{tpu_custom_call.1}
  #allocation0 [shape = 'u32[]', space=smem, size = 0x4, offset = 0x4, fixed_abs, tag = 'smem constant byte address 0x4 - core index']
  #allocation1 [shape = 'u32[144,128]{1,0:T(1,128)}', space=vmem, size = 0x12000, scoped, tag = 'internal scratch']
  %s0 = inlined_call_operand.hbm [shape: f32[8,256], index: 0, kind: input, shape index: {}]
  %s1 = inlined_call_operand.hbm [shape: f32[8,256], index: 1, kind: input, shape index: {}]
  %s2 = inlined_call_operand.vmem [shape: f32[1,512], index: 2, kind: input, shape index: {}]
  %s3 = inlined_call_operand.vmem [shape: f32[2,128], index: 3, kind: input, shape index: {}]
  %s4 = inlined_call_operand.hbm [shape: f32[256,256], index: 4, kind: input, shape index: {}]
  %s5 = inlined_call_operand.hbm [shape: f32[256,256], index: 5, kind: input, shape index: {}]
  %s6 = inlined_call_operand.hbm [shape: f32[256,512], index: 6, kind: input, shape index: {}]
  %s7 = inlined_call_operand.hbm [shape: f32[512,256], index: 7, kind: input, shape index: {}]
  %s8 = inlined_call_operand.hbm [shape: f32[256,128], index: 8, kind: input, shape index: {}]
  %s9 = inlined_call_operand.hbm [shape: f32[128,128], index: 9, kind: input, shape index: {}]
  %s10 = inlined_call_operand.hbm [shape: f32[8,128], index: 10, kind: output, shape index: {}]
  %s11 = sld [smem:[#allocation0]]
  $region82: #{tpu_custom_call.1} parent=0
    _
  %s13 = ssub.s32 1, %s11
  %s14 = scalar_select 0, %s13, %s11
  $region1: #{tpu_custom_call.1} parent=0
    #allocation2 [shape = 'u8[8192]{0}', space=vmem, size = 0x2000, scoped, tag = 'input window, operand 0, single buffered']
    #allocation3 [shape = 's32[1]{0}', space=sflag, size = 0x4, scoped, tag = 'scoped memory for tpu_custom_call.1']
    #allocation4 [shape = 's32[1]{0}', space=sflag, size = 0x4, scoped, tag = 'scoped memory for tpu_custom_call.1']
    #allocation5 [shape = 'u8[8192]{0}', space=vmem, size = 0x2000, scoped, tag = 'input window, operand 1, single buffered']
    #allocation6 [shape = 's32[1]{0}', space=sflag, size = 0x4, scoped, tag = 'scoped memory for tpu_custom_call.1']
    #allocation7 [shape = 'u8[262144]{0}', space=vmem, size = 0x40000, scoped, tag = 'input window, operand 4, single buffered']
    #allocation8 [shape = 'u8[262144]{0}', space=vmem, size = 0x40000, scoped, tag = 'input window, operand 5, single buffered']
    #allocation9 [shape = 's32[1]{0}', space=sflag, size = 0x4, scoped, tag = 'scoped memory for tpu_custom_call.1']
    #allocation10 [shape = 'u8[524288]{0}', space=vmem, size = 0x80000, scoped, tag = 'input window, operand 6, single buffered']
    #allocation11 [shape = 'u8[524288]{0}', space=vmem, size = 0x80000, scoped, tag = 'input window, operand 7, single buffered']
    #allocation12 [shape = 's32[1]{0}', space=sflag, size = 0x4, scoped, tag = 'scoped memory for tpu_custom_call.1']
    #allocation13 [shape = 'u8[131072]{0}', space=vmem, size = 0x20000, scoped, tag = 'input window, operand 8, single buffered']
    #allocation14 [shape = 'u8[65536]{0}', space=vmem, size = 0x10000, scoped, tag = 'input window, operand 9, single buffered']
    #allocation15 [shape = 's32[1]{0}', space=sflag, size = 0x4, scoped, tag = 'scoped memory for tpu_custom_call.1']
    #allocation16 [shape = 'u8[4096]{0}', space=vmem, size = 0x1000, scoped, tag = 'output window, operand 0, single buffered']
    %15 = vsyncpa [#allocation3], 0
    %16 = vsyncpa [#allocation6], 0
    %17 = vsyncpa [#allocation9], 0
    %18 = vsyncpa [#allocation12], 0
    %19 = vsyncpa [#allocation15], 0
    %20 = vsyncpa [#allocation4], 0
    // Predicated region
    $region2: #{tpu_custom_call.1} parent=1 // pred_check
      _
    $region3: #{tpu_custom_call.1} parent=1 // pred_check_branch
      %22 = sbr.rel (0) target = $region5
    $region4: #{tpu_custom_call.1} parent=1 // pred_region
      %s24 = ssub.s32 256, 256
      %25 = vsyncadd [#allocation3], %s24
      %s27 = sshll.u32 [#allocation2], 4
      %s28 = int_to_ptr.vmem [resolvable:$true] %s27
      %30 = dma.hbm_to_vmem [thread:$0]  %s0, 256, %s28, [#allocation3]
    $region5: #{tpu_custom_call.1} parent=1 // pred_fallthru
      _
    // Predicated region
    $region6: #{tpu_custom_call.1} parent=1 // pred_check
      _
    $region7: #{tpu_custom_call.1} parent=1 // pred_check_branch
      %32 = sbr.rel (0) target = $region9
    $region8: #{tpu_custom_call.1} parent=1 // pred_region
      %s34 = ssub.s32 256, 256
      %35 = vsyncadd [#allocation6], %s34
      %s37 = sshll.u32 [#allocation5], 4
      %s38 = int_to_ptr.vmem [resolvable:$true] %s37
      %40 = dma.hbm_to_vmem [thread:$0]  %s1, 256, %s38, [#allocation6]
    $region9: #{tpu_custom_call.1} parent=1 // pred_fallthru
      _
    // Predicated region
    $region10: #{tpu_custom_call.1} parent=1 // pred_check
      _
    $region11: #{tpu_custom_call.1} parent=1 // pred_check_branch
      %42 = sbr.rel (0) target = $region13
    $region12: #{tpu_custom_call.1} parent=1 // pred_region
      _
    $region13: #{tpu_custom_call.1} parent=1 // pred_fallthru
      _
    // Predicated region
    $region14: #{tpu_custom_call.1} parent=1 // pred_check
      _
    $region15: #{tpu_custom_call.1} parent=1 // pred_check_branch
      %44 = sbr.rel (0) target = $region17
    $region16: #{tpu_custom_call.1} parent=1 // pred_region
      _
    $region17: #{tpu_custom_call.1} parent=1 // pred_fallthru
      _
    // Predicated region
    $region18: #{tpu_custom_call.1} parent=1 // pred_check
      _
    $region19: #{tpu_custom_call.1} parent=1 // pred_check_branch
      %46 = sbr.rel (0) target = $region21
    $region20: #{tpu_custom_call.1} parent=1 // pred_region
      %s48 = ssub.s32 8192, 8192
      %49 = vsyncadd [#allocation6], %s48
      %s50 = sshll.u32 [#allocation7], 4
      %s51 = int_to_ptr.vmem [resolvable:$true] %s50
      %56 = dma.hbm_to_vmem [thread:$0]  %s4, 8192, %s51, [#allocation6], 256, 256, 16
    $region21: #{tpu_custom_call.1} parent=1 // pred_fallthru
      _
    // Predicated region
    $region22: #{tpu_custom_call.1} parent=1 // pred_check
      _
    $region23: #{tpu_custom_call.1} parent=1 // pred_check_branch
      %58 = sbr.rel (0) target = $region25
    $region24: #{tpu_custom_call.1} parent=1 // pred_region
      %s60 = ssub.s32 8192, 8192
      %61 = vsyncadd [#allocation9], %s60
      %s62 = sshll.u32 [#allocation8], 4
      %s63 = int_to_ptr.vmem [resolvable:$true] %s62
      %68 = dma.hbm_to_vmem [thread:$0]  %s5, 8192, %s63, [#allocation9], 256, 256, 16
    $region25: #{tpu_custom_call.1} parent=1 // pred_fallthru
      _
    // Predicated region
    $region26: #{tpu_custom_call.1} parent=1 // pred_check
      _
    $region27: #{tpu_custom_call.1} parent=1 // pred_check_branch
      %70 = sbr.rel (0) target = $region29
    $region28: #{tpu_custom_call.1} parent=1 // pred_region
      %s72 = ssub.s32 16384, 16384
      %73 = vsyncadd [#allocation9], %s72
      %s74 = sshll.u32 [#allocation10], 4
      %s75 = int_to_ptr.vmem [resolvable:$true] %s74
      %80 = dma.hbm_to_vmem [thread:$0]  %s6, 16384, %s75, [#allocation9], 512, 512, 32
    $region29: #{tpu_custom_call.1} parent=1 // pred_fallthru
      _
    // Predicated region
    $region30: #{tpu_custom_call.1} parent=1 // pred_check
      _
    $region31: #{tpu_custom_call.1} parent=1 // pred_check_branch
      %82 = sbr.rel (0) target = $region33
    $region32: #{tpu_custom_call.1} parent=1 // pred_region
      %s84 = ssub.s32 16384, 16384
      %85 = vsyncadd [#allocation12], %s84
      %s86 = sshll.u32 [#allocation11], 4
      %s87 = int_to_ptr.vmem [resolvable:$true] %s86
      %92 = dma.hbm_to_vmem [thread:$0]  %s7, 16384, %s87, [#allocation12], 256, 256, 16
    $region33: #{tpu_custom_call.1} parent=1 // pred_fallthru
      _
    // Predicated region
    $region34: #{tpu_custom_call.1} parent=1 // pred_check
      _
    $region35: #{tpu_custom_call.1} parent=1 // pred_check_branch
      %94 = sbr.rel (0) target = $region37
    $region36: #{tpu_custom_call.1} parent=1 // pred_region
      %s96 = ssub.s32 4096, 4096
      %97 = vsyncadd [#allocation12], %s96
      %s98 = sshll.u32 [#allocation13], 4
      %s99 = int_to_ptr.vmem [resolvable:$true] %s98
      %104 = dma.hbm_to_vmem [thread:$0]  %s8, 4096, %s99, [#allocation12], 128, 128, 8
    $region37: #{tpu_custom_call.1} parent=1 // pred_fallthru
      _
    // Predicated region
    $region38: #{tpu_custom_call.1} parent=1 // pred_check
      _
    $region39: #{tpu_custom_call.1} parent=1 // pred_check_branch
      %106 = sbr.rel (0) target = $region41
    $region40: #{tpu_custom_call.1} parent=1 // pred_region
      %s108 = ssub.s32 2048, 2048
      %109 = vsyncadd [#allocation15], %s108
      %s110 = sshll.u32 [#allocation14], 4
      %s111 = int_to_ptr.vmem [resolvable:$true] %s110
      %116 = dma.hbm_to_vmem [thread:$0]  %s9, 2048, %s111, [#allocation15], 128, 128, 8
    $region41: #{tpu_custom_call.1} parent=1 // pred_fallthru
      _
    // Predicated region
    $region42: #{tpu_custom_call.1} parent=1 // pred_check
      _
    $region43: #{tpu_custom_call.1} parent=1 // pred_check_branch
      %118 = sbr.rel (0) target = $region45
    $region44: #{tpu_custom_call.1} parent=1 // pred_region
      %119 = dma.done [#allocation3], 256
    $region45: #{tpu_custom_call.1} parent=1 // pred_fallthru
      _
    // Predicated region
    $region46: #{tpu_custom_call.1} parent=1 // pred_check
      _
    $region47: #{tpu_custom_call.1} parent=1 // pred_check_branch
      %121 = sbr.rel (0) target = $region49
    $region48: #{tpu_custom_call.1} parent=1 // pred_region
      %122 = dma.done [#allocation6], 256
    $region49: #{tpu_custom_call.1} parent=1 // pred_fallthru
      _
    // Predicated region
    $region50: #{tpu_custom_call.1} parent=1 // pred_check
      _
    $region51: #{tpu_custom_call.1} parent=1 // pred_check_branch
      %124 = sbr.rel (0) target = $region53
    $region52: #{tpu_custom_call.1} parent=1 // pred_region
      %125 = dma.done [#allocation6], 8192
    $region53: #{tpu_custom_call.1} parent=1 // pred_fallthru
      _
    // Predicated region
    $region54: #{tpu_custom_call.1} parent=1 // pred_check
      _
    $region55: #{tpu_custom_call.1} parent=1 // pred_check_branch
      %127 = sbr.rel (0) target = $region57
    $region56: #{tpu_custom_call.1} parent=1 // pred_region
      %128 = dma.done [#allocation9], 8192
    $region57: #{tpu_custom_call.1} parent=1 // pred_fallthru
      _
    // Predicated region
    $region58: #{tpu_custom_call.1} parent=1 // pred_check
      _
    $region59: #{tpu_custom_call.1} parent=1 // pred_check_branch
      %130 = sbr.rel (0) target = $region61
    $region60: #{tpu_custom_call.1} parent=1 // pred_region
      %131 = dma.done [#allocation9], 16384
    $region61: #{tpu_custom_call.1} parent=1 // pred_fallthru
      _
    // Predicated region
    $region62: #{tpu_custom_call.1} parent=1 // pred_check
      _
    $region63: #{tpu_custom_call.1} parent=1 // pred_check_branch
      %133 = sbr.rel (0) target = $region65
    $region64: #{tpu_custom_call.1} parent=1 // pred_region
      %134 = dma.done [#allocation12], 16384
    $region65: #{tpu_custom_call.1} parent=1 // pred_fallthru
      _
    // Predicated region
    $region66: #{tpu_custom_call.1} parent=1 // pred_check
      _
    $region67: #{tpu_custom_call.1} parent=1 // pred_check_branch
      %136 = sbr.rel (0) target = $region69
    $region68: #{tpu_custom_call.1} parent=1 // pred_region
      %137 = dma.done [#allocation12], 4096
    $region69: #{tpu_custom_call.1} parent=1 // pred_fallthru
      _
    // Predicated region
    $region70: #{tpu_custom_call.1} parent=1 // pred_check
      _
    $region71: #{tpu_custom_call.1} parent=1 // pred_check_branch
      %139 = sbr.rel (0) target = $region73
    $region72: #{tpu_custom_call.1} parent=1 // pred_region
      %140 = dma.done [#allocation15], 2048
    $region73: #{tpu_custom_call.1} parent=1 // pred_fallthru
      _
    %v141 = vld [vmem:[#allocation2] sm:$0xff]
    %v142 = vld [vmem:[#allocation2 + $0x8] sm:$0xff]
    %v143 = vld [vmem:[#allocation7] sm:$0xff]
    %v144 = vld [vmem:[#allocation7 + $0x8] sm:$0xff]
    %v145 = vld [vmem:[#allocation7 + $0x10] sm:$0xff]
    %v146 = vld [vmem:[#allocation7 + $0x18] sm:$0xff]
    %v147 = vld [vmem:[#allocation7 + $0x20] sm:$0xff]
    %v148 = vld [vmem:[#allocation7 + $0x28] sm:$0xff]
    %v149 = vld [vmem:[#allocation7 + $0x30] sm:$0xff]
    %v150 = vld [vmem:[#allocation7 + $0x38] sm:$0xff]
    %v151 = vld [vmem:[#allocation7 + $0x40] sm:$0xff]
    %v152 = vld [vmem:[#allocation7 + $0x48] sm:$0xff]
    %v153 = vld [vmem:[#allocation7 + $0x50] sm:$0xff]
    %v154 = vld [vmem:[#allocation7 + $0x58] sm:$0xff]
    %v155 = vld [vmem:[#allocation7 + $0x60] sm:$0xff]
    %v156 = vld [vmem:[#allocation7 + $0x68] sm:$0xff]
    %v157 = vld [vmem:[#allocation7 + $0x70] sm:$0xff]
    %v158 = vld [vmem:[#allocation7 + $0x78] sm:$0xff]
    %v159 = vld [vmem:[#allocation7 + $0x80] sm:$0xff]
    %v160 = vld [vmem:[#allocation7 + $0x88] sm:$0xff]
    %v161 = vld [vmem:[#allocation7 + $0x90] sm:$0xff]
    %v162 = vld [vmem:[#allocation7 + $0x98] sm:$0xff]
    %v163 = vld [vmem:[#allocation7 + $0xa0] sm:$0xff]
    %v164 = vld [vmem:[#allocation7 + $0xa8] sm:$0xff]
    %v165 = vld [vmem:[#allocation7 + $0xb0] sm:$0xff]
    %v166 = vld [vmem:[#allocation7 + $0xb8] sm:$0xff]
    %v167 = vld [vmem:[#allocation7 + $0xc0] sm:$0xff]
    %v168 = vld [vmem:[#allocation7 + $0xc8] sm:$0xff]
    %v169 = vld [vmem:[#allocation7 + $0xd0] sm:$0xff]
    %v170 = vld [vmem:[#allocation7 + $0xd8] sm:$0xff]
    %v171 = vld [vmem:[#allocation7 + $0xe0] sm:$0xff]
    %v172 = vld [vmem:[#allocation7 + $0xe8] sm:$0xff]
    %v173 = vld [vmem:[#allocation7 + $0xf0] sm:$0xff]
    %v174 = vld [vmem:[#allocation7 + $0xf8] sm:$0xff]
    %v175 = vld [vmem:[#allocation7 + $0x100] sm:$0xff]
    %v176 = vld [vmem:[#allocation7 + $0x108] sm:$0xff]
    %v177 = vld [vmem:[#allocation7 + $0x110] sm:$0xff]
    %v178 = vld [vmem:[#allocation7 + $0x118] sm:$0xff]
    %v179 = vld [vmem:[#allocation7 + $0x120] sm:$0xff]
    %v180 = vld [vmem:[#allocation7 + $0x128] sm:$0xff]
    %v181 = vld [vmem:[#allocation7 + $0x130] sm:$0xff]
    %v182 = vld [vmem:[#allocation7 + $0x138] sm:$0xff]
    %v183 = vld [vmem:[#allocation7 + $0x140] sm:$0xff]
    %v184 = vld [vmem:[#allocation7 + $0x148] sm:$0xff]
    %v185 = vld [vmem:[#allocation7 + $0x150] sm:$0xff]
    %v186 = vld [vmem:[#allocation7 + $0x158] sm:$0xff]
    %v187 = vld [vmem:[#allocation7 + $0x160] sm:$0xff]
    %v188 = vld [vmem:[#allocation7 + $0x168] sm:$0xff]
    %v189 = vld [vmem:[#allocation7 + $0x170] sm:$0xff]
    %v190 = vld [vmem:[#allocation7 + $0x178] sm:$0xff]
    %v191 = vld [vmem:[#allocation7 + $0x180] sm:$0xff]
    %v192 = vld [vmem:[#allocation7 + $0x188] sm:$0xff]
    %v193 = vld [vmem:[#allocation7 + $0x190] sm:$0xff]
    %v194 = vld [vmem:[#allocation7 + $0x198] sm:$0xff]
    %v195 = vld [vmem:[#allocation7 + $0x1a0] sm:$0xff]
    %v196 = vld [vmem:[#allocation7 + $0x1a8] sm:$0xff]
    %v197 = vld [vmem:[#allocation7 + $0x1b0] sm:$0xff]
    %v198 = vld [vmem:[#allocation7 + $0x1b8] sm:$0xff]
    %v199 = vld [vmem:[#allocation7 + $0x1c0] sm:$0xff]
    %v200 = vld [vmem:[#allocation7 + $0x1c8] sm:$0xff]
    %v201 = vld [vmem:[#allocation7 + $0x1d0] sm:$0xff]
    %v202 = vld [vmem:[#allocation7 + $0x1d8] sm:$0xff]
    %v203 = vld [vmem:[#allocation7 + $0x1e0] sm:$0xff]
    %v204 = vld [vmem:[#allocation7 + $0x1e8] sm:$0xff]
    %v205 = vld [vmem:[#allocation7 + $0x1f0] sm:$0xff]
    %v206 = vld [vmem:[#allocation7 + $0x1f8] sm:$0xff]
    %v207 = vld [vmem:[#allocation5] sm:$0xff]
    %v208 = vld [vmem:[#allocation5 + $0x8] sm:$0xff]
    %v209 = vld [vmem:[%s3] sm:$0x3]
    %210 = vmatprep.subr.mxu0 %v144
    %211 = vmatpush1.msra.mxu0 %v143
    %212 = vmatprep.subr.mxu0 %v146
    %213 = vmatpush1.msra.mxu0 %v145
    %214 = vmatprep.subr.mxu0 %v148
    %215 = vmatpush1.msra.mxu0 %v147
    %216 = vmatprep.subr.mxu0 %v150
    %217 = vmatpush1.msra.mxu0 %v149
    %218 = vmatprep.subr.mxu0 %v152
    %219 = vmatpush1.msra.mxu0 %v151
    %220 = vmatprep.subr.mxu0 %v154
    %221 = vmatpush1.msra.mxu0 %v153
    %222 = vmatprep.subr.mxu0 %v156
    %223 = vmatpush1.msra.mxu0 %v155
    %224 = vmatprep.subr.mxu0 %v158
    %225 = vmatpush1.msra.mxu0 %v157
    %226 = vmatprep.subr.mxu0 %v160
    %227 = vmatpush1.msra.mxu0 %v159
    %228 = vmatprep.subr.mxu0 %v162
    %229 = vmatpush1.msra.mxu0 %v161
    %230 = vmatprep.subr.mxu0 %v164
    %231 = vmatpush1.msra.mxu0 %v163
    %232 = vmatprep.subr.mxu0 %v166
    %233 = vmatpush1.msra.mxu0 %v165
    %234 = vmatprep.subr.mxu0 %v168
    %235 = vmatpush1.msra.mxu0 %v167
    %236 = vmatprep.subr.mxu0 %v170
    %237 = vmatpush1.msra.mxu0 %v169
    %238 = vmatprep.subr.mxu0 %v172
    %239 = vmatpush1.msra.mxu0 %v171
    %240 = vmatprep.subr.mxu0 %v174
    %241 = vmatpush1.msra.mxu0 %v173
    %242 = vmatprep.subr.mxu0 %v176
    %243 = vmatpush1.msra.mxu0 %v175
    %244 = vmatprep.subr.mxu0 %v178
    %245 = vmatpush1.msra.mxu0 %v177
    %246 = vmatprep.subr.mxu0 %v180
    %247 = vmatpush1.msra.mxu0 %v179
    %248 = vmatprep.subr.mxu0 %v182
    %249 = vmatpush1.msra.mxu0 %v181
    %250 = vmatprep.subr.mxu0 %v184
    %251 = vmatpush1.msra.mxu0 %v183
    %252 = vmatprep.subr.mxu0 %v186
    %253 = vmatpush1.msra.mxu0 %v185
    %254 = vmatprep.subr.mxu0 %v188
    %255 = vmatpush1.msra.mxu0 %v187
    %256 = vmatprep.subr.mxu0 %v190
    %257 = vmatpush1.msra.mxu0 %v189
    %258 = vmatprep.subr.mxu0 %v192
    %259 = vmatpush1.msra.mxu0 %v191
    %260 = vmatprep.subr.mxu0 %v194
    %261 = vmatpush1.msra.mxu0 %v193
    %262 = vmatprep.subr.mxu0 %v196
    %263 = vmatpush1.msra.mxu0 %v195
    %264 = vmatprep.subr.mxu0 %v198
    %265 = vmatpush1.msra.mxu0 %v197
    %266 = vmatprep.subr.mxu0 %v200
    %267 = vmatpush1.msra.mxu0 %v199
    %268 = vmatprep.subr.mxu0 %v202
    %269 = vmatpush1.msra.mxu0 %v201
    %270 = vmatprep.subr.mxu0 %v204
    %271 = vmatpush1.msra.mxu0 %v203
    %272 = vmatprep.subr.mxu0 %v206
    %273 = vmatpush1.msra.mxu0 %v205
    %274 = vmatprep.mubr.f32.mxu0 %v142
    %275 = vmatmul.mubr.f32.gmra.mrb[0].mxu0 %v141
    %v276 = vpop.f32.mrb[0].mxu0
    %v277 = vadd.f32 0.0, %v276
    %v278 = vpop.f32.mrb[0].mxu0
    %v279 = vadd.f32 0.0, %v278
    %280 = vdwg.mxu0
    %vm281 = vcmp.ne.f32.partialorder %v277, 0.0
    %vm282 = vcmp.ne.f32.partialorder %v279, 0.0
    %v283 = vsel %vm281, 1, 0
    %v284 = vsel %vm282, 1, 0
    %v285 = vcvt.s32.f32 %v283
    %v286 = vcvt.s32.f32 %v284
    %v287 = vlaneseq
    %v288 = vshrl.u32 %v287, 7
    %v289 = vsub.s32 0, %v288
    %v290 = vrot.slane %v207, %v289
    %v291 = vlaneseq
    %v292 = vshrl.u32 %v291, 7
    %v293 = vsub.s32 0, %v292
    %v294 = vrot.slane %v208, %v293
    %v295 = vmul.f32 %v290, %v285
    %v296 = vmul.f32 %v294, %v286
    %v297 = vadd.f32 %v141, %v295
    %v298 = vadd.f32 %v142, %v296
    %299 = vmatprep.subr.mxu0 %v144
    %300 = vmatpush1.msra.mxu0 %v143
    %301 = vmatprep.subr.mxu0 %v146
    %302 = vmatpush1.msra.mxu0 %v145
    %303 = vmatprep.subr.mxu0 %v148
    %304 = vmatpush1.msra.mxu0 %v147
    %305 = vmatprep.subr.mxu0 %v150
    %306 = vmatpush1.msra.mxu0 %v149
    %307 = vmatprep.subr.mxu0 %v152
    %308 = vmatpush1.msra.mxu0 %v151
    %309 = vmatprep.subr.mxu0 %v154
    %310 = vmatpush1.msra.mxu0 %v153
    %311 = vmatprep.subr.mxu0 %v156
    %312 = vmatpush1.msra.mxu0 %v155
    %313 = vmatprep.subr.mxu0 %v158
    %314 = vmatpush1.msra.mxu0 %v157
    %315 = vmatprep.subr.mxu0 %v160
    %316 = vmatpush1.msra.mxu0 %v159
    %317 = vmatprep.subr.mxu0 %v162
    %318 = vmatpush1.msra.mxu0 %v161
    %319 = vmatprep.subr.mxu0 %v164
    %320 = vmatpush1.msra.mxu0 %v163
    %321 = vmatprep.subr.mxu0 %v166
    %322 = vmatpush1.msra.mxu0 %v165
    %323 = vmatprep.subr.mxu0 %v168
    %324 = vmatpush1.msra.mxu0 %v167
    %325 = vmatprep.subr.mxu0 %v170
    %326 = vmatpush1.msra.mxu0 %v169
    %327 = vmatprep.subr.mxu0 %v172
    %328 = vmatpush1.msra.mxu0 %v171
    %329 = vmatprep.subr.mxu0 %v174
    %330 = vmatpush1.msra.mxu0 %v173
    %331 = vmatprep.subr.mxu0 %v176
    %332 = vmatpush1.msra.mxu0 %v175
    %333 = vmatprep.subr.mxu0 %v178
    %334 = vmatpush1.msra.mxu0 %v177
    %335 = vmatprep.subr.mxu0 %v180
    %336 = vmatpush1.msra.mxu0 %v179
    %337 = vmatprep.subr.mxu0 %v182
    %338 = vmatpush1.msra.mxu0 %v181
    %339 = vmatprep.subr.mxu0 %v184
    %340 = vmatpush1.msra.mxu0 %v183
    %341 = vmatprep.subr.mxu0 %v186
    %342 = vmatpush1.msra.mxu0 %v185
    %343 = vmatprep.subr.mxu0 %v188
    %344 = vmatpush1.msra.mxu0 %v187
    %345 = vmatprep.subr.mxu0 %v190
    %346 = vmatpush1.msra.mxu0 %v189
    %347 = vmatprep.subr.mxu0 %v192
    %348 = vmatpush1.msra.mxu0 %v191
    %349 = vmatprep.subr.mxu0 %v194
    %350 = vmatpush1.msra.mxu0 %v193
    %351 = vmatprep.subr.mxu0 %v196
    %352 = vmatpush1.msra.mxu0 %v195
    %353 = vmatprep.subr.mxu0 %v198
    %354 = vmatpush1.msra.mxu0 %v197
    %355 = vmatprep.subr.mxu0 %v200
    %356 = vmatpush1.msra.mxu0 %v199
    %357 = vmatprep.subr.mxu0 %v202
    %358 = vmatpush1.msra.mxu0 %v201
    %359 = vmatprep.subr.mxu0 %v204
    %360 = vmatpush1.msra.mxu0 %v203
    %361 = vmatprep.subr.mxu0 %v206
    %362 = vmatpush1.msra.mxu0 %v205
    %363 = vmatprep.mubr.f32.mxu0 %v298
    %364 = vmatmul.mubr.f32.gmra.mrb[0].mxu0 %v297
    %v365 = vpop.f32.mrb[0].mxu0
    %v366 = vadd.f32 0.0, %v365
    %v367 = vpop.f32.mrb[0].mxu0
    %v368 = vadd.f32 0.0, %v367
    %369 = vdwg.mxu0
    %vm370 = vcmp.ne.f32.partialorder %v366, 0.0
    %vm371 = vcmp.ne.f32.partialorder %v368, 0.0
    %v372 = vsel %vm370, 1, 0
    %v373 = vsel %vm371, 1, 0
    %v374 = vcvt.s32.f32 %v372
    %v375 = vcvt.s32.f32 %v373
    %v376 = vadd.f32 %v374, %v375
    %377 = vadd.xlane.f32.xlu0 %v376
    %v378 = vpop.xlane.xlu0 %377
    %v379 = vadd.f32 %v297, %v298
    %380 = vadd.xlane.f32.xlu0 %v379
    %v381 = vpop.xlane.xlu0 %380
    %v382 = vrcp.pop %v378
    %v383 = vmul.f32 %v381, %v382
    %v384 = vsub.f32 %v297, %v383
    %v385 = vsub.f32 %v298, %v383
    %v386 = vmul.f32 %v384, %v374
    %v387 = vmul.f32 %v385, %v375
    %v388 = vmul.f32 %v386, %v386
    %v389 = vmul.f32 %v387, %v387
    %v390 = vadd.f32 %v388, 1e-05
    %v391 = vadd.f32 %v389, 1e-05
    %v392 = vrsqrt.pop %v390
    %v393 = vmul.f32 %v390, %v392
    %vm394 = vcmp.eq.f32.partialorder %v390, inf
    %v395 = vsel %vm394, %v390, %v393
    %vm396 = vcmp.eq.f32.partialorder %v390, 0.0
    %v397 = vand.u32 %v390, 2147483648
    %v398 = vsel %vm396, %v397, %v395
    %v399 = vrsqrt.pop %v391
    %v400 = vmul.f32 %v391, %v399
    %vm401 = vcmp.eq.f32.partialorder %v391, inf
    %v402 = vsel %vm401, %v391, %v400
    %vm403 = vcmp.eq.f32.partialorder %v391, 0.0
    %v404 = vand.u32 %v391, 2147483648
    %v405 = vsel %vm403, %v404, %v402
    %v406 = vrcp.pop %v398
    %v407 = vmul.f32 %v386, %v406
    %v408 = vrcp.pop %v405
    %v409 = vmul.f32 %v387, %v408
    %v410 = vlaneseq
    %v411 = vshrl.u32 %v410, 7
    %v412 = vsub.s32 1, %v411
    %v413 = vrot.slane %v207, %v412
    %v414 = vlaneseq
    %v415 = vshrl.u32 %v414, 7
    %v416 = vsub.s32 1, %v415
    %v417 = vrot.slane %v208, %v416
    %v418 = vmul.f32 %v407, %v413
    %v419 = vmul.f32 %v409, %v417
    %v420 = vlaneseq
    %v421 = vshrl.u32 %v420, 7
    %v422 = vsub.s32 2, %v421
    %v423 = vrot.slane %v207, %v422
    %v424 = vlaneseq
    %v425 = vshrl.u32 %v424, 7
    %v426 = vsub.s32 2, %v425
    %v427 = vrot.slane %v208, %v426
    %v428 = vadd.f32 %v418, %v423
    %v429 = vadd.f32 %v419, %v427
    %v430 = vld [vmem:[#allocation8] sm:$0xff]
    %v431 = vld [vmem:[#allocation8 + $0x8] sm:$0xff]
    %v432 = vld [vmem:[#allocation8 + $0x10] sm:$0xff]
    %v433 = vld [vmem:[#allocation8 + $0x18] sm:$0xff]
    %v434 = vld [vmem:[#allocation8 + $0x20] sm:$0xff]
    %v435 = vld [vmem:[#allocation8 + $0x28] sm:$0xff]
    %v436 = vld [vmem:[#allocation8 + $0x30] sm:$0xff]
    %v437 = vld [vmem:[#allocation8 + $0x38] sm:$0xff]
    %v438 = vld [vmem:[#allocation8 + $0x40] sm:$0xff]
    %v439 = vld [vmem:[#allocation8 + $0x48] sm:$0xff]
    %v440 = vld [vmem:[#allocation8 + $0x50] sm:$0xff]
    %v441 = vld [vmem:[#allocation8 + $0x58] sm:$0xff]
    %v442 = vld [vmem:[#allocation8 + $0x60] sm:$0xff]
    %v443 = vld [vmem:[#allocation8 + $0x68] sm:$0xff]
    %v444 = vld [vmem:[#allocation8 + $0x70] sm:$0xff]
    %v445 = vld [vmem:[#allocation8 + $0x78] sm:$0xff]
    %v446 = vld [vmem:[#allocation8 + $0x80] sm:$0xff]
    %v447 = vld [vmem:[#allocation8 + $0x88] sm:$0xff]
    %v448 = vld [vmem:[#allocation8 + $0x90] sm:$0xff]
    %v449 = vld [vmem:[#allocation8 + $0x98] sm:$0xff]
    %v450 = vld [vmem:[#allocation8 + $0xa0] sm:$0xff]
    %v451 = vld [vmem:[#allocation8 + $0xa8] sm:$0xff]
    %v452 = vld [vmem:[#allocation8 + $0xb0] sm:$0xff]
    %v453 = vld [vmem:[#allocation8 + $0xb8] sm:$0xff]
    %v454 = vld [vmem:[#allocation8 + $0xc0] sm:$0xff]
    %v455 = vld [vmem:[#allocation8 + $0xc8] sm:$0xff]
    %v456 = vld [vmem:[#allocation8 + $0xd0] sm:$0xff]
    %v457 = vld [vmem:[#allocation8 + $0xd8] sm:$0xff]
    %v458 = vld [vmem:[#allocation8 + $0xe0] sm:$0xff]
    %v459 = vld [vmem:[#allocation8 + $0xe8] sm:$0xff]
    %v460 = vld [vmem:[#allocation8 + $0xf0] sm:$0xff]
    %v461 = vld [vmem:[#allocation8 + $0xf8] sm:$0xff]
    %v462 = vld [vmem:[#allocation8 + $0x100] sm:$0xff]
    %v463 = vld [vmem:[#allocation8 + $0x108] sm:$0xff]
    %v464 = vld [vmem:[#allocation8 + $0x110] sm:$0xff]
    %v465 = vld [vmem:[#allocation8 + $0x118] sm:$0xff]
    %v466 = vld [vmem:[#allocation8 + $0x120] sm:$0xff]
    %v467 = vld [vmem:[#allocation8 + $0x128] sm:$0xff]
    %v468 = vld [vmem:[#allocation8 + $0x130] sm:$0xff]
    %v469 = vld [vmem:[#allocation8 + $0x138] sm:$0xff]
    %v470 = vld [vmem:[#allocation8 + $0x140] sm:$0xff]
    %v471 = vld [vmem:[#allocation8 + $0x148] sm:$0xff]
    %v472 = vld [vmem:[#allocation8 + $0x150] sm:$0xff]
    %v473 = vld [vmem:[#allocation8 + $0x158] sm:$0xff]
    %v474 = vld [vmem:[#allocation8 + $0x160] sm:$0xff]
    %v475 = vld [vmem:[#allocation8 + $0x168] sm:$0xff]
    %v476 = vld [vmem:[#allocation8 + $0x170] sm:$0xff]
    %v477 = vld [vmem:[#allocation8 + $0x178] sm:$0xff]
    %v478 = vld [vmem:[#allocation8 + $0x180] sm:$0xff]
    %v479 = vld [vmem:[#allocation8 + $0x188] sm:$0xff]
    %v480 = vld [vmem:[#allocation8 + $0x190] sm:$0xff]
    %v481 = vld [vmem:[#allocation8 + $0x198] sm:$0xff]
    %v482 = vld [vmem:[#allocation8 + $0x1a0] sm:$0xff]
    %v483 = vld [vmem:[#allocation8 + $0x1a8] sm:$0xff]
    %v484 = vld [vmem:[#allocation8 + $0x1b0] sm:$0xff]
    %v485 = vld [vmem:[#allocation8 + $0x1b8] sm:$0xff]
    %v486 = vld [vmem:[#allocation8 + $0x1c0] sm:$0xff]
    %v487 = vld [vmem:[#allocation8 + $0x1c8] sm:$0xff]
    %v488 = vld [vmem:[#allocation8 + $0x1d0] sm:$0xff]
    %v489 = vld [vmem:[#allocation8 + $0x1d8] sm:$0xff]
    %v490 = vld [vmem:[#allocation8 + $0x1e0] sm:$0xff]
    %v491 = vld [vmem:[#allocation8 + $0x1e8] sm:$0xff]
    %v492 = vld [vmem:[#allocation8 + $0x1f0] sm:$0xff]
    %v493 = vld [vmem:[#allocation8 + $0x1f8] sm:$0xff]
    %494 = vmatprep.subr.mxu0 %v431
    %495 = vmatpush1.msra.mxu0 %v430
    %496 = vmatprep.subr.mxu0 %v433
    %497 = vmatpush1.msra.mxu0 %v432
    %498 = vmatprep.subr.mxu0 %v435
    %499 = vmatpush1.msra.mxu0 %v434
    %500 = vmatprep.subr.mxu0 %v437
    %501 = vmatpush1.msra.mxu0 %v436
    %502 = vmatprep.subr.mxu0 %v439
    %503 = vmatpush1.msra.mxu0 %v438
    %504 = vmatprep.subr.mxu0 %v441
    %505 = vmatpush1.msra.mxu0 %v440
    %506 = vmatprep.subr.mxu0 %v443
    %507 = vmatpush1.msra.mxu0 %v442
    %508 = vmatprep.subr.mxu0 %v445
    %509 = vmatpush1.msra.mxu0 %v444
    %510 = vmatprep.subr.mxu0 %v447
    %511 = vmatpush1.msra.mxu0 %v446
    %512 = vmatprep.subr.mxu0 %v449
    %513 = vmatpush1.msra.mxu0 %v448
    %514 = vmatprep.subr.mxu0 %v451
    %515 = vmatpush1.msra.mxu0 %v450
    %516 = vmatprep.subr.mxu0 %v453
    %517 = vmatpush1.msra.mxu0 %v452
    %518 = vmatprep.subr.mxu0 %v455
    %519 = vmatpush1.msra.mxu0 %v454
    %520 = vmatprep.subr.mxu0 %v457
    %521 = vmatpush1.msra.mxu0 %v456
    %522 = vmatprep.subr.mxu0 %v459
    %523 = vmatpush1.msra.mxu0 %v458
    %524 = vmatprep.subr.mxu0 %v461
    %525 = vmatpush1.msra.mxu0 %v460
    %526 = vmatprep.subr.mxu0 %v463
    %527 = vmatpush1.msra.mxu0 %v462
    %528 = vmatprep.subr.mxu0 %v465
    %529 = vmatpush1.msra.mxu0 %v464
    %530 = vmatprep.subr.mxu0 %v467
    %531 = vmatpush1.msra.mxu0 %v466
    %532 = vmatprep.subr.mxu0 %v469
    %533 = vmatpush1.msra.mxu0 %v468
    %534 = vmatprep.subr.mxu0 %v471
    %535 = vmatpush1.msra.mxu0 %v470
    %536 = vmatprep.subr.mxu0 %v473
    %537 = vmatpush1.msra.mxu0 %v472
    %538 = vmatprep.subr.mxu0 %v475
    %539 = vmatpush1.msra.mxu0 %v474
    %540 = vmatprep.subr.mxu0 %v477
    %541 = vmatpush1.msra.mxu0 %v476
    %542 = vmatprep.subr.mxu0 %v479
    %543 = vmatpush1.msra.mxu0 %v478
    %544 = vmatprep.subr.mxu0 %v481
    %545 = vmatpush1.msra.mxu0 %v480
    %546 = vmatprep.subr.mxu0 %v483
    %547 = vmatpush1.msra.mxu0 %v482
    %548 = vmatprep.subr.mxu0 %v485
    %549 = vmatpush1.msra.mxu0 %v484
    %550 = vmatprep.subr.mxu0 %v487
    %551 = vmatpush1.msra.mxu0 %v486
    %552 = vmatprep.subr.mxu0 %v489
    %553 = vmatpush1.msra.mxu0 %v488
    %554 = vmatprep.subr.mxu0 %v491
    %555 = vmatpush1.msra.mxu0 %v490
    %556 = vmatprep.subr.mxu0 %v493
    %557 = vmatpush1.msra.mxu0 %v492
    %558 = vmatprep.mubr.f32.mxu0 %v429
    %559 = vmatmul.mubr.f32.gmra.mrb[0].mxu0 %v428
    %v560 = vpop.f32.mrb[0].mxu0
    %v561 = vadd.f32 0.0, %v560
    %v562 = vpop.f32.mrb[0].mxu0
    %v563 = vadd.f32 0.0, %v562
    %564 = vdwg.mxu0
    %565 = vmatprep.subr.mxu0 %v144
    %566 = vmatpush1.msra.mxu0 %v143
    %567 = vmatprep.subr.mxu0 %v146
    %568 = vmatpush1.msra.mxu0 %v145
    %569 = vmatprep.subr.mxu0 %v148
    %570 = vmatpush1.msra.mxu0 %v147
    %571 = vmatprep.subr.mxu0 %v150
    %572 = vmatpush1.msra.mxu0 %v149
    %573 = vmatprep.subr.mxu0 %v152
    %574 = vmatpush1.msra.mxu0 %v151
    %575 = vmatprep.subr.mxu0 %v154
    %576 = vmatpush1.msra.mxu0 %v153
    %577 = vmatprep.subr.mxu0 %v156
    %578 = vmatpush1.msra.mxu0 %v155
    %579 = vmatprep.subr.mxu0 %v158
    %580 = vmatpush1.msra.mxu0 %v157
    %581 = vmatprep.subr.mxu0 %v160
    %582 = vmatpush1.msra.mxu0 %v159
    %583 = vmatprep.subr.mxu0 %v162
    %584 = vmatpush1.msra.mxu0 %v161
    %585 = vmatprep.subr.mxu0 %v164
    %586 = vmatpush1.msra.mxu0 %v163
    %587 = vmatprep.subr.mxu0 %v166
    %588 = vmatpush1.msra.mxu0 %v165
    %589 = vmatprep.subr.mxu0 %v168
    %590 = vmatpush1.msra.mxu0 %v167
    %591 = vmatprep.subr.mxu0 %v170
    %592 = vmatpush1.msra.mxu0 %v169
    %593 = vmatprep.subr.mxu0 %v172
    %594 = vmatpush1.msra.mxu0 %v171
    %595 = vmatprep.subr.mxu0 %v174
    %596 = vmatpush1.msra.mxu0 %v173
    %597 = vmatprep.subr.mxu0 %v176
    %598 = vmatpush1.msra.mxu0 %v175
    %599 = vmatprep.subr.mxu0 %v178
    %600 = vmatpush1.msra.mxu0 %v177
    %601 = vmatprep.subr.mxu0 %v180
    %602 = vmatpush1.msra.mxu0 %v179
    %603 = vmatprep.subr.mxu0 %v182
    %604 = vmatpush1.msra.mxu0 %v181
    %605 = vmatprep.subr.mxu0 %v184
    %606 = vmatpush1.msra.mxu0 %v183
    %607 = vmatprep.subr.mxu0 %v186
    %608 = vmatpush1.msra.mxu0 %v185
    %609 = vmatprep.subr.mxu0 %v188
    %610 = vmatpush1.msra.mxu0 %v187
    %611 = vmatprep.subr.mxu0 %v190
    %612 = vmatpush1.msra.mxu0 %v189
    %613 = vmatprep.subr.mxu0 %v192
    %614 = vmatpush1.msra.mxu0 %v191
    %615 = vmatprep.subr.mxu0 %v194
    %616 = vmatpush1.msra.mxu0 %v193
    %617 = vmatprep.subr.mxu0 %v196
    %618 = vmatpush1.msra.mxu0 %v195
    %619 = vmatprep.subr.mxu0 %v198
    %620 = vmatpush1.msra.mxu0 %v197
    %621 = vmatprep.subr.mxu0 %v200
    %622 = vmatpush1.msra.mxu0 %v199
    %623 = vmatprep.subr.mxu0 %v202
    %624 = vmatpush1.msra.mxu0 %v201
    %625 = vmatprep.subr.mxu0 %v204
    %626 = vmatpush1.msra.mxu0 %v203
    %627 = vmatprep.subr.mxu0 %v206
    %628 = vmatpush1.msra.mxu0 %v205
    %629 = vmatprep.mubr.f32.mxu0 %v563
    %630 = vmatmul.mubr.f32.gmra.mrb[0].mxu0 %v561
    %v631 = vpop.f32.mrb[0].mxu0
    %v632 = vadd.f32 0.0, %v631
    %v633 = vpop.f32.mrb[0].mxu0
    %v634 = vadd.f32 0.0, %v633
    %635 = vdwg.mxu0
    %vm636 = vcmp.ne.f32.partialorder %v632, 0.0
    %vm637 = vcmp.ne.f32.partialorder %v634, 0.0
    %v638 = vsel %vm636, 1, 0
    %v639 = vsel %vm637, 1, 0
    %v640 = vcvt.s32.f32 %v638
    %v641 = vcvt.s32.f32 %v639
    %v642 = vadd.f32 %v640, %v641
    %643 = vadd.xlane.f32.xlu0 %v642
    %v644 = vpop.xlane.xlu0 %643
    %v645 = vadd.f32 %v561, %v563
    %646 = vadd.xlane.f32.xlu0 %v645
    %v647 = vpop.xlane.xlu0 %646
    %v648 = vrcp.pop %v644
    %v649 = vmul.f32 %v647, %v648
    %v650 = vsub.f32 %v561, %v649
    %v651 = vsub.f32 %v563, %v649
    %v652 = vmul.f32 %v650, %v640
    %v653 = vmul.f32 %v651, %v641
    %v654 = vmul.f32 %v652, %v652
    %v655 = vmul.f32 %v653, %v653
    %v656 = vadd.f32 %v654, 1e-05
    %v657 = vadd.f32 %v655, 1e-05
    %v658 = vrsqrt.pop %v656
    %v659 = vmul.f32 %v656, %v658
    %vm660 = vcmp.eq.f32.partialorder %v656, inf
    %v661 = vsel %vm660, %v656, %v659
    %vm662 = vcmp.eq.f32.partialorder %v656, 0.0
    %v663 = vand.u32 %v656, 2147483648
    %v664 = vsel %vm662, %v663, %v661
    %v665 = vrsqrt.pop %v657
    %v666 = vmul.f32 %v657, %v665
    %vm667 = vcmp.eq.f32.partialorder %v657, inf
    %v668 = vsel %vm667, %v657, %v666
    %vm669 = vcmp.eq.f32.partialorder %v657, 0.0
    %v670 = vand.u32 %v657, 2147483648
    %v671 = vsel %vm669, %v670, %v668
    %v672 = vrcp.pop %v664
    %v673 = vmul.f32 %v652, %v672
    %v674 = vrcp.pop %v671
    %v675 = vmul.f32 %v653, %v674
    %v676 = vlaneseq
    %v677 = vshrl.u32 %v676, 7
    %v678 = vsub.s32 3, %v677
    %v679 = vrot.slane %v207, %v678
    %v680 = vlaneseq
    %v681 = vshrl.u32 %v680, 7
    %v682 = vsub.s32 3, %v681
    %v683 = vrot.slane %v208, %v682
    %v684 = vmul.f32 %v673, %v679
    %v685 = vmul.f32 %v675, %v683
    %v686 = vlaneseq
    %v687 = vshrl.u32 %v686, 7
    %v688 = vsub.s32 4, %v687
    %v689 = vrot.slane %v207, %v688
    %v690 = vlaneseq
    %v691 = vshrl.u32 %v690, 7
    %v692 = vsub.s32 4, %v691
    %v693 = vrot.slane %v208, %v692
    %v694 = vadd.f32 %v684, %v689
    %v695 = vadd.f32 %v685, %v693
    %v696 = vld [vmem:[#allocation10] sm:$0xff]
    %v697 = vld [vmem:[#allocation10 + $0x8] sm:$0xff]
    %v698 = vld [vmem:[#allocation10 + $0x10] sm:$0xff]
    %v699 = vld [vmem:[#allocation10 + $0x18] sm:$0xff]
    %v700 = vld [vmem:[#allocation10 + $0x20] sm:$0xff]
    %v701 = vld [vmem:[#allocation10 + $0x28] sm:$0xff]
    %v702 = vld [vmem:[#allocation10 + $0x30] sm:$0xff]
    %v703 = vld [vmem:[#allocation10 + $0x38] sm:$0xff]
    %v704 = vld [vmem:[#allocation10 + $0x40] sm:$0xff]
    %v705 = vld [vmem:[#allocation10 + $0x48] sm:$0xff]
    %v706 = vld [vmem:[#allocation10 + $0x50] sm:$0xff]
    %v707 = vld [vmem:[#allocation10 + $0x58] sm:$0xff]
    %v708 = vld [vmem:[#allocation10 + $0x60] sm:$0xff]
    %v709 = vld [vmem:[#allocation10 + $0x68] sm:$0xff]
    %v710 = vld [vmem:[#allocation10 + $0x70] sm:$0xff]
    %v711 = vld [vmem:[#allocation10 + $0x78] sm:$0xff]
    %v712 = vld [vmem:[#allocation10 + $0x80] sm:$0xff]
    %v713 = vld [vmem:[#allocation10 + $0x88] sm:$0xff]
    %v714 = vld [vmem:[#allocation10 + $0x90] sm:$0xff]
    %v715 = vld [vmem:[#allocation10 + $0x98] sm:$0xff]
    %v716 = vld [vmem:[#allocation10 + $0xa0] sm:$0xff]
    %v717 = vld [vmem:[#allocation10 + $0xa8] sm:$0xff]
    %v718 = vld [vmem:[#allocation10 + $0xb0] sm:$0xff]
    %v719 = vld [vmem:[#allocation10 + $0xb8] sm:$0xff]
    %v720 = vld [vmem:[#allocation10 + $0xc0] sm:$0xff]
    %v721 = vld [vmem:[#allocation10 + $0xc8] sm:$0xff]
    %v722 = vld [vmem:[#allocation10 + $0xd0] sm:$0xff]
    %v723 = vld [vmem:[#allocation10 + $0xd8] sm:$0xff]
    %v724 = vld [vmem:[#allocation10 + $0xe0] sm:$0xff]
    %v725 = vld [vmem:[#allocation10 + $0xe8] sm:$0xff]
    %v726 = vld [vmem:[#allocation10 + $0xf0] sm:$0xff]
    %v727 = vld [vmem:[#allocation10 + $0xf8] sm:$0xff]
    %v728 = vld [vmem:[#allocation10 + $0x100] sm:$0xff]
    %v729 = vld [vmem:[#allocation10 + $0x108] sm:$0xff]
    %v730 = vld [vmem:[#allocation10 + $0x110] sm:$0xff]
    %v731 = vld [vmem:[#allocation10 + $0x118] sm:$0xff]
    %v732 = vld [vmem:[#allocation10 + $0x120] sm:$0xff]
    %v733 = vld [vmem:[#allocation10 + $0x128] sm:$0xff]
    %v734 = vld [vmem:[#allocation10 + $0x130] sm:$0xff]
    %v735 = vld [vmem:[#allocation10 + $0x138] sm:$0xff]
    %v736 = vld [vmem:[#allocation10 + $0x140] sm:$0xff]
    %v737 = vld [vmem:[#allocation10 + $0x148] sm:$0xff]
    %v738 = vld [vmem:[#allocation10 + $0x150] sm:$0xff]
    %v739 = vld [vmem:[#allocation10 + $0x158] sm:$0xff]
    %v740 = vld [vmem:[#allocation10 + $0x160] sm:$0xff]
    %v741 = vld [vmem:[#allocation10 + $0x168] sm:$0xff]
    %v742 = vld [vmem:[#allocation10 + $0x170] sm:$0xff]
    %v743 = vld [vmem:[#allocation10 + $0x178] sm:$0xff]
    %v744 = vld [vmem:[#allocation10 + $0x180] sm:$0xff]
    %v745 = vld [vmem:[#allocation10 + $0x188] sm:$0xff]
    %v746 = vld [vmem:[#allocation10 + $0x190] sm:$0xff]
    %v747 = vld [vmem:[#allocation10 + $0x198] sm:$0xff]
    %v748 = vld [vmem:[#allocation10 + $0x1a0] sm:$0xff]
    %v749 = vld [vmem:[#allocation10 + $0x1a8] sm:$0xff]
    %v750 = vld [vmem:[#allocation10 + $0x1b0] sm:$0xff]
    %v751 = vld [vmem:[#allocation10 + $0x1b8] sm:$0xff]
    %v752 = vld [vmem:[#allocation10 + $0x1c0] sm:$0xff]
    %v753 = vld [vmem:[#allocation10 + $0x1c8] sm:$0xff]
    %v754 = vld [vmem:[#allocation10 + $0x1d0] sm:$0xff]
    %v755 = vld [vmem:[#allocation10 + $0x1d8] sm:$0xff]
    %v756 = vld [vmem:[#allocation10 + $0x1e0] sm:$0xff]
    %v757 = vld [vmem:[#allocation10 + $0x1e8] sm:$0xff]
    %v758 = vld [vmem:[#allocation10 + $0x1f0] sm:$0xff]
    %v759 = vld [vmem:[#allocation10 + $0x1f8] sm:$0xff]
    %v760 = vld [vmem:[#allocation10 + $0x200] sm:$0xff]
    %v761 = vld [vmem:[#allocation10 + $0x208] sm:$0xff]
    %v762 = vld [vmem:[#allocation10 + $0x210] sm:$0xff]
    %v763 = vld [vmem:[#allocation10 + $0x218] sm:$0xff]
    %v764 = vld [vmem:[#allocation10 + $0x220] sm:$0xff]
    %v765 = vld [vmem:[#allocation10 + $0x228] sm:$0xff]
    %v766 = vld [vmem:[#allocation10 + $0x230] sm:$0xff]
    %v767 = vld [vmem:[#allocation10 + $0x238] sm:$0xff]
    %v768 = vld [vmem:[#allocation10 + $0x240] sm:$0xff]
    %v769 = vld [vmem:[#allocation10 + $0x248] sm:$0xff]
    %v770 = vld [vmem:[#allocation10 + $0x250] sm:$0xff]
    %v771 = vld [vmem:[#allocation10 + $0x258] sm:$0xff]
    %v772 = vld [vmem:[#allocation10 + $0x260] sm:$0xff]
    %v773 = vld [vmem:[#allocation10 + $0x268] sm:$0xff]
    %v774 = vld [vmem:[#allocation10 + $0x270] sm:$0xff]
    %v775 = vld [vmem:[#allocation10 + $0x278] sm:$0xff]
    %v776 = vld [vmem:[#allocation10 + $0x280] sm:$0xff]
    %v777 = vld [vmem:[#allocation10 + $0x288] sm:$0xff]
    %v778 = vld [vmem:[#allocation10 + $0x290] sm:$0xff]
    %v779 = vld [vmem:[#allocation10 + $0x298] sm:$0xff]
    %v780 = vld [vmem:[#allocation10 + $0x2a0] sm:$0xff]
    %v781 = vld [vmem:[#allocation10 + $0x2a8] sm:$0xff]
    %v782 = vld [vmem:[#allocation10 + $0x2b0] sm:$0xff]
    %v783 = vld [vmem:[#allocation10 + $0x2b8] sm:$0xff]
    %v784 = vld [vmem:[#allocation10 + $0x2c0] sm:$0xff]
    %v785 = vld [vmem:[#allocation10 + $0x2c8] sm:$0xff]
    %v786 = vld [vmem:[#allocation10 + $0x2d0] sm:$0xff]
    %v787 = vld [vmem:[#allocation10 + $0x2d8] sm:$0xff]
    %v788 = vld [vmem:[#allocation10 + $0x2e0] sm:$0xff]
    %v789 = vld [vmem:[#allocation10 + $0x2e8] sm:$0xff]
    %v790 = vld [vmem:[#allocation10 + $0x2f0] sm:$0xff]
    %v791 = vld [vmem:[#allocation10 + $0x2f8] sm:$0xff]
    %v792 = vld [vmem:[#allocation10 + $0x300] sm:$0xff]
    %v793 = vld [vmem:[#allocation10 + $0x308] sm:$0xff]
    %v794 = vld [vmem:[#allocation10 + $0x310] sm:$0xff]
    %v795 = vld [vmem:[#allocation10 + $0x318] sm:$0xff]
    %v796 = vld [vmem:[#allocation10 + $0x320] sm:$0xff]
    %v797 = vld [vmem:[#allocation10 + $0x328] sm:$0xff]
    %v798 = vld [vmem:[#allocation10 + $0x330] sm:$0xff]
    %v799 = vld [vmem:[#allocation10 + $0x338] sm:$0xff]
    %v800 = vld [vmem:[#allocation10 + $0x340] sm:$0xff]
    %v801 = vld [vmem:[#allocation10 + $0x348] sm:$0xff]
    %v802 = vld [vmem:[#allocation10 + $0x350] sm:$0xff]
    %v803 = vld [vmem:[#allocation10 + $0x358] sm:$0xff]
    %v804 = vld [vmem:[#allocation10 + $0x360] sm:$0xff]
    %v805 = vld [vmem:[#allocation10 + $0x368] sm:$0xff]
    %v806 = vld [vmem:[#allocation10 + $0x370] sm:$0xff]
    %v807 = vld [vmem:[#allocation10 + $0x378] sm:$0xff]
    %v808 = vld [vmem:[#allocation10 + $0x380] sm:$0xff]
    %v809 = vld [vmem:[#allocation10 + $0x388] sm:$0xff]
    %v810 = vld [vmem:[#allocation10 + $0x390] sm:$0xff]
    %v811 = vld [vmem:[#allocation10 + $0x398] sm:$0xff]
    %v812 = vld [vmem:[#allocation10 + $0x3a0] sm:$0xff]
    %v813 = vld [vmem:[#allocation10 + $0x3a8] sm:$0xff]
    %v814 = vld [vmem:[#allocation10 + $0x3b0] sm:$0xff]
    %v815 = vld [vmem:[#allocation10 + $0x3b8] sm:$0xff]
    %v816 = vld [vmem:[#allocation10 + $0x3c0] sm:$0xff]
    %v817 = vld [vmem:[#allocation10 + $0x3c8] sm:$0xff]
    %v818 = vld [vmem:[#allocation10 + $0x3d0] sm:$0xff]
    %v819 = vld [vmem:[#allocation10 + $0x3d8] sm:$0xff]
    %v820 = vld [vmem:[#allocation10 + $0x3e0] sm:$0xff]
    %v821 = vld [vmem:[#allocation10 + $0x3e8] sm:$0xff]
    %v822 = vld [vmem:[#allocation10 + $0x3f0] sm:$0xff]
    %v823 = vld [vmem:[#allocation10 + $0x3f8] sm:$0xff]
    %v824 = vld [vmem:[%s2] sm:$0xf]
    %v826 = vlaneseq
    %v827 = vshrl.u32 %v826, 7
    %v828 = vsub.s32 0, %v827
    %v829 = vrot.slane %v824, %v828
    %v830 = vlaneseq
    %v831 = vshrl.u32 %v830, 7
    %v832 = vsub.s32 1, %v831
    %v833 = vrot.slane %v824, %v832
    %v834 = vlaneseq
    %v835 = vshrl.u32 %v834, 7
    %v836 = vsub.s32 2, %v835
    %v837 = vrot.slane %v824, %v836
    %v838 = vlaneseq
    %v839 = vshrl.u32 %v838, 7
    %v840 = vsub.s32 3, %v839
    %v841 = vrot.slane %v824, %v840
    %846 = vmatprep.subr.mxu0 %v697
    %847 = vmatpush1.msra.mxu0 %v696
    %848 = vmatprep.subr.mxu0 %v701
    %849 = vmatpush1.msra.mxu0 %v700
    %850 = vmatprep.subr.mxu0 %v705
    %851 = vmatpush1.msra.mxu0 %v704
    %852 = vmatprep.subr.mxu0 %v709
    %853 = vmatpush1.msra.mxu0 %v708
    %854 = vmatprep.subr.mxu0 %v713
    %855 = vmatpush1.msra.mxu0 %v712
    %856 = vmatprep.subr.mxu0 %v717
    %857 = vmatpush1.msra.mxu0 %v716
    %858 = vmatprep.subr.mxu0 %v721
    %859 = vmatpush1.msra.mxu0 %v720
    %860 = vmatprep.subr.mxu0 %v725
    %861 = vmatpush1.msra.mxu0 %v724
    %862 = vmatprep.subr.mxu0 %v729
    %863 = vmatpush1.msra.mxu0 %v728
    %864 = vmatprep.subr.mxu0 %v733
    %865 = vmatpush1.msra.mxu0 %v732
    %866 = vmatprep.subr.mxu0 %v737
    %867 = vmatpush1.msra.mxu0 %v736
    %868 = vmatprep.subr.mxu0 %v741
    %869 = vmatpush1.msra.mxu0 %v740
    %870 = vmatprep.subr.mxu0 %v745
    %871 = vmatpush1.msra.mxu0 %v744
    %872 = vmatprep.subr.mxu0 %v749
    %873 = vmatpush1.msra.mxu0 %v748
    %874 = vmatprep.subr.mxu0 %v753
    %875 = vmatpush1.msra.mxu0 %v752
    %876 = vmatprep.subr.mxu0 %v757
    %877 = vmatpush1.msra.mxu0 %v756
    %878 = vmatprep.subr.mxu0 %v761
    %879 = vmatpush1.msra.mxu0 %v760
    %880 = vmatprep.subr.mxu0 %v765
    %881 = vmatpush1.msra.mxu0 %v764
    %882 = vmatprep.subr.mxu0 %v769
    %883 = vmatpush1.msra.mxu0 %v768
    %884 = vmatprep.subr.mxu0 %v773
    %885 = vmatpush1.msra.mxu0 %v772
    %886 = vmatprep.subr.mxu0 %v777
    %887 = vmatpush1.msra.mxu0 %v776
    %888 = vmatprep.subr.mxu0 %v781
    %889 = vmatpush1.msra.mxu0 %v780
    %890 = vmatprep.subr.mxu0 %v785
    %891 = vmatpush1.msra.mxu0 %v784
    %892 = vmatprep.subr.mxu0 %v789
    %893 = vmatpush1.msra.mxu0 %v788
    %894 = vmatprep.subr.mxu0 %v793
    %895 = vmatpush1.msra.mxu0 %v792
    %896 = vmatprep.subr.mxu0 %v797
    %897 = vmatpush1.msra.mxu0 %v796
    %898 = vmatprep.subr.mxu0 %v801
    %899 = vmatpush1.msra.mxu0 %v800
    %900 = vmatprep.subr.mxu0 %v805
    %901 = vmatpush1.msra.mxu0 %v804
    %902 = vmatprep.subr.mxu0 %v809
    %903 = vmatpush1.msra.mxu0 %v808
    %904 = vmatprep.subr.mxu0 %v813
    %905 = vmatpush1.msra.mxu0 %v812
    %906 = vmatprep.subr.mxu0 %v817
    %907 = vmatpush1.msra.mxu0 %v816
    %908 = vmatprep.subr.mxu0 %v821
    %909 = vmatpush1.msra.mxu0 %v820
    %910 = vmatprep.mubr.f32.mxu0 %v695
    %911 = vmatmul.mubr.f32.gmra.mrb[0].mxu0 %v694
    %v912 = vpop.f32.mrb[0].mxu0
    %v913 = vadd.f32 %v829, %v912
    %v914 = vpop.f32.mrb[0].mxu0
    %v915 = vadd.f32 %v833, %v914
    %916 = vdwg.mxu0
    %917 = vmatprep.subr.mxu0 %v699
    %918 = vmatpush1.msra.mxu0 %v698
    %919 = vmatprep.subr.mxu0 %v703
    %920 = vmatpush1.msra.mxu0 %v702
    %921 = vmatprep.subr.mxu0 %v707
    %922 = vmatpush1.msra.mxu0 %v706
    %923 = vmatprep.subr.mxu0 %v711
    %924 = vmatpush1.msra.mxu0 %v710
    %925 = vmatprep.subr.mxu0 %v715
    %926 = vmatpush1.msra.mxu0 %v714
    %927 = vmatprep.subr.mxu0 %v719
    %928 = vmatpush1.msra.mxu0 %v718
    %929 = vmatprep.subr.mxu0 %v723
    %930 = vmatpush1.msra.mxu0 %v722
    %931 = vmatprep.subr.mxu0 %v727
    %932 = vmatpush1.msra.mxu0 %v726
    %933 = vmatprep.subr.mxu0 %v731
    %934 = vmatpush1.msra.mxu0 %v730
    %935 = vmatprep.subr.mxu0 %v735
    %936 = vmatpush1.msra.mxu0 %v734
    %937 = vmatprep.subr.mxu0 %v739
    %938 = vmatpush1.msra.mxu0 %v738
    %939 = vmatprep.subr.mxu0 %v743
    %940 = vmatpush1.msra.mxu0 %v742
    %941 = vmatprep.subr.mxu0 %v747
    %942 = vmatpush1.msra.mxu0 %v746
    %943 = vmatprep.subr.mxu0 %v751
    %944 = vmatpush1.msra.mxu0 %v750
    %945 = vmatprep.subr.mxu0 %v755
    %946 = vmatpush1.msra.mxu0 %v754
    %947 = vmatprep.subr.mxu0 %v759
    %948 = vmatpush1.msra.mxu0 %v758
    %949 = vmatprep.subr.mxu0 %v763
    %950 = vmatpush1.msra.mxu0 %v762
    %951 = vmatprep.subr.mxu0 %v767
    %952 = vmatpush1.msra.mxu0 %v766
    %953 = vmatprep.subr.mxu0 %v771
    %954 = vmatpush1.msra.mxu0 %v770
    %955 = vmatprep.subr.mxu0 %v775
    %956 = vmatpush1.msra.mxu0 %v774
    %957 = vmatprep.subr.mxu0 %v779
    %958 = vmatpush1.msra.mxu0 %v778
    %959 = vmatprep.subr.mxu0 %v783
    %960 = vmatpush1.msra.mxu0 %v782
    %961 = vmatprep.subr.mxu0 %v787
    %962 = vmatpush1.msra.mxu0 %v786
    %963 = vmatprep.subr.mxu0 %v791
    %964 = vmatpush1.msra.mxu0 %v790
    %965 = vmatprep.subr.mxu0 %v795
    %966 = vmatpush1.msra.mxu0 %v794
    %967 = vmatprep.subr.mxu0 %v799
    %968 = vmatpush1.msra.mxu0 %v798
    %969 = vmatprep.subr.mxu0 %v803
    %970 = vmatpush1.msra.mxu0 %v802
    %971 = vmatprep.subr.mxu0 %v807
    %972 = vmatpush1.msra.mxu0 %v806
    %973 = vmatprep.subr.mxu0 %v811
    %974 = vmatpush1.msra.mxu0 %v810
    %975 = vmatprep.subr.mxu0 %v815
    %976 = vmatpush1.msra.mxu0 %v814
    %977 = vmatprep.subr.mxu0 %v819
    %978 = vmatpush1.msra.mxu0 %v818
    %979 = vmatprep.subr.mxu0 %v823
    %980 = vmatpush1.msra.mxu0 %v822
    %981 = vmatprep.mubr.f32.mxu0 %v695
    %982 = vmatmul.mubr.f32.gmra.mrb[0].mxu0 %v694
    %v983 = vpop.f32.mrb[0].mxu0
    %v984 = vadd.f32 %v837, %v983
    %v985 = vpop.f32.mrb[0].mxu0
    %v986 = vadd.f32 %v841, %v985
    %987 = vdwg.mxu0
    %v988 = vmul.f32 %v913, 0.5
    %v989 = vmul.f32 %v915, 0.5
    %v990 = vmul.f32 %v984, 0.5
    %v991 = vmul.f32 %v986, 0.5
    %v992 = vmul.f32 %v913, 0.70710677
    %v993 = vmul.f32 %v915, 0.70710677
    %v994 = vmul.f32 %v984, 0.70710677
    %v995 = vmul.f32 %v986, 0.70710677
    %v996 = verf.f32.pop %v992
    %v997 = verf.f32.pop %v993
    %v998 = verf.f32.pop %v994
    %v999 = verf.f32.pop %v995
    %v1000 = vadd.f32 %v996, 1.0
    %v1001 = vadd.f32 %v997, 1.0
    %v1002 = vadd.f32 %v998, 1.0
    %v1003 = vadd.f32 %v999, 1.0
    %v1004 = vmul.f32 %v988, %v1000
    %v1005 = vmul.f32 %v989, %v1001
    %v1006 = vmul.f32 %v990, %v1002
    %v1007 = vmul.f32 %v991, %v1003
    %v1008 = vld [vmem:[#allocation11] sm:$0xff]
    %v1009 = vld [vmem:[#allocation11 + $0x8] sm:$0xff]
    %v1010 = vld [vmem:[#allocation11 + $0x10] sm:$0xff]
    %v1011 = vld [vmem:[#allocation11 + $0x18] sm:$0xff]
    %v1012 = vld [vmem:[#allocation11 + $0x20] sm:$0xff]
    %v1013 = vld [vmem:[#allocation11 + $0x28] sm:$0xff]
    %v1014 = vld [vmem:[#allocation11 + $0x30] sm:$0xff]
    %v1015 = vld [vmem:[#allocation11 + $0x38] sm:$0xff]
    %v1016 = vld [vmem:[#allocation11 + $0x40] sm:$0xff]
    %v1017 = vld [vmem:[#allocation11 + $0x48] sm:$0xff]
    %v1018 = vld [vmem:[#allocation11 + $0x50] sm:$0xff]
    %v1019 = vld [vmem:[#allocation11 + $0x58] sm:$0xff]
    %v1020 = vld [vmem:[#allocation11 + $0x60] sm:$0xff]
    %v1021 = vld [vmem:[#allocation11 + $0x68] sm:$0xff]
    %v1022 = vld [vmem:[#allocation11 + $0x70] sm:$0xff]
    %v1023 = vld [vmem:[#allocation11 + $0x78] sm:$0xff]
    %v1024 = vld [vmem:[#allocation11 + $0x80] sm:$0xff]
    %v1025 = vld [vmem:[#allocation11 + $0x88] sm:$0xff]
    %v1026 = vld [vmem:[#allocation11 + $0x90] sm:$0xff]
    %v1027 = vld [vmem:[#allocation11 + $0x98] sm:$0xff]
    %v1028 = vld [vmem:[#allocation11 + $0xa0] sm:$0xff]
    %v1029 = vld [vmem:[#allocation11 + $0xa8] sm:$0xff]
    %v1030 = vld [vmem:[#allocation11 + $0xb0] sm:$0xff]
    %v1031 = vld [vmem:[#allocation11 + $0xb8] sm:$0xff]
    %v1032 = vld [vmem:[#allocation11 + $0xc0] sm:$0xff]
    %v1033 = vld [vmem:[#allocation11 + $0xc8] sm:$0xff]
    %v1034 = vld [vmem:[#allocation11 + $0xd0] sm:$0xff]
    %v1035 = vld [vmem:[#allocation11 + $0xd8] sm:$0xff]
    %v1036 = vld [vmem:[#allocation11 + $0xe0] sm:$0xff]
    %v1037 = vld [vmem:[#allocation11 + $0xe8] sm:$0xff]
    %v1038 = vld [vmem:[#allocation11 + $0xf0] sm:$0xff]
    %v1039 = vld [vmem:[#allocation11 + $0xf8] sm:$0xff]
    %v1040 = vld [vmem:[#allocation11 + $0x100] sm:$0xff]
    %v1041 = vld [vmem:[#allocation11 + $0x108] sm:$0xff]
    %v1042 = vld [vmem:[#allocation11 + $0x110] sm:$0xff]
    %v1043 = vld [vmem:[#allocation11 + $0x118] sm:$0xff]
    %v1044 = vld [vmem:[#allocation11 + $0x120] sm:$0xff]
    %v1045 = vld [vmem:[#allocation11 + $0x128] sm:$0xff]
    %v1046 = vld [vmem:[#allocation11 + $0x130] sm:$0xff]
    %v1047 = vld [vmem:[#allocation11 + $0x138] sm:$0xff]
    %v1048 = vld [vmem:[#allocation11 + $0x140] sm:$0xff]
    %v1049 = vld [vmem:[#allocation11 + $0x148] sm:$0xff]
    %v1050 = vld [vmem:[#allocation11 + $0x150] sm:$0xff]
    %v1051 = vld [vmem:[#allocation11 + $0x158] sm:$0xff]
    %v1052 = vld [vmem:[#allocation11 + $0x160] sm:$0xff]
    %v1053 = vld [vmem:[#allocation11 + $0x168] sm:$0xff]
    %v1054 = vld [vmem:[#allocation11 + $0x170] sm:$0xff]
    %v1055 = vld [vmem:[#allocation11 + $0x178] sm:$0xff]
    %v1056 = vld [vmem:[#allocation11 + $0x180] sm:$0xff]
    %v1057 = vld [vmem:[#allocation11 + $0x188] sm:$0xff]
    %v1058 = vld [vmem:[#allocation11 + $0x190] sm:$0xff]
    %v1059 = vld [vmem:[#allocation11 + $0x198] sm:$0xff]
    %v1060 = vld [vmem:[#allocation11 + $0x1a0] sm:$0xff]
    %v1061 = vld [vmem:[#allocation11 + $0x1a8] sm:$0xff]
    %v1062 = vld [vmem:[#allocation11 + $0x1b0] sm:$0xff]
    %v1063 = vld [vmem:[#allocation11 + $0x1b8] sm:$0xff]
    %v1064 = vld [vmem:[#allocation11 + $0x1c0] sm:$0xff]
    %v1065 = vld [vmem:[#allocation11 + $0x1c8] sm:$0xff]
    %v1066 = vld [vmem:[#allocation11 + $0x1d0] sm:$0xff]
    %v1067 = vld [vmem:[#allocation11 + $0x1d8] sm:$0xff]
    %v1068 = vld [vmem:[#allocation11 + $0x1e0] sm:$0xff]
    %v1069 = vld [vmem:[#allocation11 + $0x1e8] sm:$0xff]
    %v1070 = vld [vmem:[#allocation11 + $0x1f0] sm:$0xff]
    %v1071 = vld [vmem:[#allocation11 + $0x1f8] sm:$0xff]
    %v1072 = vld [vmem:[#allocation11 + $0x200] sm:$0xff]
    %v1073 = vld [vmem:[#allocation11 + $0x208] sm:$0xff]
    %v1074 = vld [vmem:[#allocation11 + $0x210] sm:$0xff]
    %v1075 = vld [vmem:[#allocation11 + $0x218] sm:$0xff]
    %v1076 = vld [vmem:[#allocation11 + $0x220] sm:$0xff]
    %v1077 = vld [vmem:[#allocation11 + $0x228] sm:$0xff]
    %v1078 = vld [vmem:[#allocation11 + $0x230] sm:$0xff]
    %v1079 = vld [vmem:[#allocation11 + $0x238] sm:$0xff]
    %v1080 = vld [vmem:[#allocation11 + $0x240] sm:$0xff]
    %v1081 = vld [vmem:[#allocation11 + $0x248] sm:$0xff]
    %v1082 = vld [vmem:[#allocation11 + $0x250] sm:$0xff]
    %v1083 = vld [vmem:[#allocation11 + $0x258] sm:$0xff]
    %v1084 = vld [vmem:[#allocation11 + $0x260] sm:$0xff]
    %v1085 = vld [vmem:[#allocation11 + $0x268] sm:$0xff]
    %v1086 = vld [vmem:[#allocation11 + $0x270] sm:$0xff]
    %v1087 = vld [vmem:[#allocation11 + $0x278] sm:$0xff]
    %v1088 = vld [vmem:[#allocation11 + $0x280] sm:$0xff]
    %v1089 = vld [vmem:[#allocation11 + $0x288] sm:$0xff]
    %v1090 = vld [vmem:[#allocation11 + $0x290] sm:$0xff]
    %v1091 = vld [vmem:[#allocation11 + $0x298] sm:$0xff]
    %v1092 = vld [vmem:[#allocation11 + $0x2a0] sm:$0xff]
    %v1093 = vld [vmem:[#allocation11 + $0x2a8] sm:$0xff]
    %v1094 = vld [vmem:[#allocation11 + $0x2b0] sm:$0xff]
    %v1095 = vld [vmem:[#allocation11 + $0x2b8] sm:$0xff]
    %v1096 = vld [vmem:[#allocation11 + $0x2c0] sm:$0xff]
    %v1097 = vld [vmem:[#allocation11 + $0x2c8] sm:$0xff]
    %v1098 = vld [vmem:[#allocation11 + $0x2d0] sm:$0xff]
    %v1099 = vld [vmem:[#allocation11 + $0x2d8] sm:$0xff]
    %v1100 = vld [vmem:[#allocation11 + $0x2e0] sm:$0xff]
    %v1101 = vld [vmem:[#allocation11 + $0x2e8] sm:$0xff]
    %v1102 = vld [vmem:[#allocation11 + $0x2f0] sm:$0xff]
    %v1103 = vld [vmem:[#allocation11 + $0x2f8] sm:$0xff]
    %v1104 = vld [vmem:[#allocation11 + $0x300] sm:$0xff]
    %v1105 = vld [vmem:[#allocation11 + $0x308] sm:$0xff]
    %v1106 = vld [vmem:[#allocation11 + $0x310] sm:$0xff]
    %v1107 = vld [vmem:[#allocation11 + $0x318] sm:$0xff]
    %v1108 = vld [vmem:[#allocation11 + $0x320] sm:$0xff]
    %v1109 = vld [vmem:[#allocation11 + $0x328] sm:$0xff]
    %v1110 = vld [vmem:[#allocation11 + $0x330] sm:$0xff]
    %v1111 = vld [vmem:[#allocation11 + $0x338] sm:$0xff]
    %v1112 = vld [vmem:[#allocation11 + $0x340] sm:$0xff]
    %v1113 = vld [vmem:[#allocation11 + $0x348] sm:$0xff]
    %v1114 = vld [vmem:[#allocation11 + $0x350] sm:$0xff]
    %v1115 = vld [vmem:[#allocation11 + $0x358] sm:$0xff]
    %v1116 = vld [vmem:[#allocation11 + $0x360] sm:$0xff]
    %v1117 = vld [vmem:[#allocation11 + $0x368] sm:$0xff]
    %v1118 = vld [vmem:[#allocation11 + $0x370] sm:$0xff]
    %v1119 = vld [vmem:[#allocation11 + $0x378] sm:$0xff]
    %v1120 = vld [vmem:[#allocation11 + $0x380] sm:$0xff]
    %v1121 = vld [vmem:[#allocation11 + $0x388] sm:$0xff]
    %v1122 = vld [vmem:[#allocation11 + $0x390] sm:$0xff]
    %v1123 = vld [vmem:[#allocation11 + $0x398] sm:$0xff]
    %v1124 = vld [vmem:[#allocation11 + $0x3a0] sm:$0xff]
    %v1125 = vld [vmem:[#allocation11 + $0x3a8] sm:$0xff]
    %v1126 = vld [vmem:[#allocation11 + $0x3b0] sm:$0xff]
    %v1127 = vld [vmem:[#allocation11 + $0x3b8] sm:$0xff]
    %v1128 = vld [vmem:[#allocation11 + $0x3c0] sm:$0xff]
    %v1129 = vld [vmem:[#allocation11 + $0x3c8] sm:$0xff]
    %v1130 = vld [vmem:[#allocation11 + $0x3d0] sm:$0xff]
    %v1131 = vld [vmem:[#allocation11 + $0x3d8] sm:$0xff]
    %v1132 = vld [vmem:[#allocation11 + $0x3e0] sm:$0xff]
    %v1133 = vld [vmem:[#allocation11 + $0x3e8] sm:$0xff]
    %v1134 = vld [vmem:[#allocation11 + $0x3f0] sm:$0xff]
    %v1135 = vld [vmem:[#allocation11 + $0x3f8] sm:$0xff]
    %v1136 = vlaneseq
    %v1137 = vshrl.u32 %v1136, 7
    %v1138 = vsub.s32 7, %v1137
    %v1139 = vrot.slane %v207, %v1138
    %v1140 = vlaneseq
    %v1141 = vshrl.u32 %v1140, 7
    %v1142 = vsub.s32 7, %v1141
    %v1143 = vrot.slane %v208, %v1142
    %1144 = vmatprep.subr.mxu0 %v1009
    %1145 = vmatpush1.msra.mxu0 %v1008
    %1146 = vmatprep.subr.mxu0 %v1011
    %1147 = vmatpush1.msra.mxu0 %v1010
    %1148 = vmatprep.subr.mxu0 %v1013
    %1149 = vmatpush1.msra.mxu0 %v1012
    %1150 = vmatprep.subr.mxu0 %v1015
    %1151 = vmatpush1.msra.mxu0 %v1014
    %1152 = vmatprep.subr.mxu0 %v1017
    %1153 = vmatpush1.msra.mxu0 %v1016
    %1154 = vmatprep.subr.mxu0 %v1019
    %1155 = vmatpush1.msra.mxu0 %v1018
    %1156 = vmatprep.subr.mxu0 %v1021
    %1157 = vmatpush1.msra.mxu0 %v1020
    %1158 = vmatprep.subr.mxu0 %v1023
    %1159 = vmatpush1.msra.mxu0 %v1022
    %1160 = vmatprep.subr.mxu0 %v1025
    %1161 = vmatpush1.msra.mxu0 %v1024
    %1162 = vmatprep.subr.mxu0 %v1027
    %1163 = vmatpush1.msra.mxu0 %v1026
    %1164 = vmatprep.subr.mxu0 %v1029
    %1165 = vmatpush1.msra.mxu0 %v1028
    %1166 = vmatprep.subr.mxu0 %v1031
    %1167 = vmatpush1.msra.mxu0 %v1030
    %1168 = vmatprep.subr.mxu0 %v1033
    %1169 = vmatpush1.msra.mxu0 %v1032
    %1170 = vmatprep.subr.mxu0 %v1035
    %1171 = vmatpush1.msra.mxu0 %v1034
    %1172 = vmatprep.subr.mxu0 %v1037
    %1173 = vmatpush1.msra.mxu0 %v1036
    %1174 = vmatprep.subr.mxu0 %v1039
    %1175 = vmatpush1.msra.mxu0 %v1038
    %1176 = vmatprep.subr.mxu0 %v1041
    %1177 = vmatpush1.msra.mxu0 %v1040
    %1178 = vmatprep.subr.mxu0 %v1043
    %1179 = vmatpush1.msra.mxu0 %v1042
    %1180 = vmatprep.subr.mxu0 %v1045
    %1181 = vmatpush1.msra.mxu0 %v1044
    %1182 = vmatprep.subr.mxu0 %v1047
    %1183 = vmatpush1.msra.mxu0 %v1046
    %1184 = vmatprep.subr.mxu0 %v1049
    %1185 = vmatpush1.msra.mxu0 %v1048
    %1186 = vmatprep.subr.mxu0 %v1051
    %1187 = vmatpush1.msra.mxu0 %v1050
    %1188 = vmatprep.subr.mxu0 %v1053
    %1189 = vmatpush1.msra.mxu0 %v1052
    %1190 = vmatprep.subr.mxu0 %v1055
    %1191 = vmatpush1.msra.mxu0 %v1054
    %1192 = vmatprep.subr.mxu0 %v1057
    %1193 = vmatpush1.msra.mxu0 %v1056
    %1194 = vmatprep.subr.mxu0 %v1059
    %1195 = vmatpush1.msra.mxu0 %v1058
    %1196 = vmatprep.subr.mxu0 %v1061
    %1197 = vmatpush1.msra.mxu0 %v1060
    %1198 = vmatprep.subr.mxu0 %v1063
    %1199 = vmatpush1.msra.mxu0 %v1062
    %1200 = vmatprep.subr.mxu0 %v1065
    %1201 = vmatpush1.msra.mxu0 %v1064
    %1202 = vmatprep.subr.mxu0 %v1067
    %1203 = vmatpush1.msra.mxu0 %v1066
    %1204 = vmatprep.subr.mxu0 %v1069
    %1205 = vmatpush1.msra.mxu0 %v1068
    %1206 = vmatprep.subr.mxu0 %v1071
    %1207 = vmatpush1.msra.mxu0 %v1070
    %1208 = vmatprep.mubr.f32.mxu0 %v1005
    %1209 = vmatmul.mubr.f32.gmra.mrb[0].mxu0 %v1004
    %v1210 = vpop.f32.mrb[0].mxu0
    %v1211 = vadd.f32 %v1139, %v1210
    %v1212 = vpop.f32.mrb[0].mxu0
    %v1213 = vadd.f32 %v1143, %v1212
    %1214 = vdwg.mxu0
    %1215 = vmatprep.subr.mxu0 %v1073
    %1216 = vmatpush1.msra.mxu0 %v1072
    %1217 = vmatprep.subr.mxu0 %v1075
    %1218 = vmatpush1.msra.mxu0 %v1074
    %1219 = vmatprep.subr.mxu0 %v1077
    %1220 = vmatpush1.msra.mxu0 %v1076
    %1221 = vmatprep.subr.mxu0 %v1079
    %1222 = vmatpush1.msra.mxu0 %v1078
    %1223 = vmatprep.subr.mxu0 %v1081
    %1224 = vmatpush1.msra.mxu0 %v1080
    %1225 = vmatprep.subr.mxu0 %v1083
    %1226 = vmatpush1.msra.mxu0 %v1082
    %1227 = vmatprep.subr.mxu0 %v1085
    %1228 = vmatpush1.msra.mxu0 %v1084
    %1229 = vmatprep.subr.mxu0 %v1087
    %1230 = vmatpush1.msra.mxu0 %v1086
    %1231 = vmatprep.subr.mxu0 %v1089
    %1232 = vmatpush1.msra.mxu0 %v1088
    %1233 = vmatprep.subr.mxu0 %v1091
    %1234 = vmatpush1.msra.mxu0 %v1090
    %1235 = vmatprep.subr.mxu0 %v1093
    %1236 = vmatpush1.msra.mxu0 %v1092
    %1237 = vmatprep.subr.mxu0 %v1095
    %1238 = vmatpush1.msra.mxu0 %v1094
    %1239 = vmatprep.subr.mxu0 %v1097
    %1240 = vmatpush1.msra.mxu0 %v1096
    %1241 = vmatprep.subr.mxu0 %v1099
    %1242 = vmatpush1.msra.mxu0 %v1098
    %1243 = vmatprep.subr.mxu0 %v1101
    %1244 = vmatpush1.msra.mxu0 %v1100
    %1245 = vmatprep.subr.mxu0 %v1103
    %1246 = vmatpush1.msra.mxu0 %v1102
    %1247 = vmatprep.subr.mxu0 %v1105
    %1248 = vmatpush1.msra.mxu0 %v1104
    %1249 = vmatprep.subr.mxu0 %v1107
    %1250 = vmatpush1.msra.mxu0 %v1106
    %1251 = vmatprep.subr.mxu0 %v1109
    %1252 = vmatpush1.msra.mxu0 %v1108
    %1253 = vmatprep.subr.mxu0 %v1111
    %1254 = vmatpush1.msra.mxu0 %v1110
    %1255 = vmatprep.subr.mxu0 %v1113
    %1256 = vmatpush1.msra.mxu0 %v1112
    %1257 = vmatprep.subr.mxu0 %v1115
    %1258 = vmatpush1.msra.mxu0 %v1114
    %1259 = vmatprep.subr.mxu0 %v1117
    %1260 = vmatpush1.msra.mxu0 %v1116
    %1261 = vmatprep.subr.mxu0 %v1119
    %1262 = vmatpush1.msra.mxu0 %v1118
    %1263 = vmatprep.subr.mxu0 %v1121
    %1264 = vmatpush1.msra.mxu0 %v1120
    %1265 = vmatprep.subr.mxu0 %v1123
    %1266 = vmatpush1.msra.mxu0 %v1122
    %1267 = vmatprep.subr.mxu0 %v1125
    %1268 = vmatpush1.msra.mxu0 %v1124
    %1269 = vmatprep.subr.mxu0 %v1127
    %1270 = vmatpush1.msra.mxu0 %v1126
    %1271 = vmatprep.subr.mxu0 %v1129
    %1272 = vmatpush1.msra.mxu0 %v1128
    %1273 = vmatprep.subr.mxu0 %v1131
    %1274 = vmatpush1.msra.mxu0 %v1130
    %1275 = vmatprep.subr.mxu0 %v1133
    %1276 = vmatpush1.msra.mxu0 %v1132
    %1277 = vmatprep.subr.mxu0 %v1135
    %1278 = vmatpush1.msra.mxu0 %v1134
    %1279 = vmatprep.mubr.f32.mxu0 %v1007
    %1280 = vmatmul.mubr.f32.gmra.mrb[0].mxu0 %v1006
    %v1281 = vpop.f32.mrb[0].mxu0
    %v1282 = vadd.f32 %v1211, %v1281
    %v1283 = vpop.f32.mrb[0].mxu0
    %v1284 = vadd.f32 %v1213, %v1283
    %1285 = vdwg.mxu0
    %v1286 = vadd.f32 %v694, %v1282
    %v1287 = vadd.f32 %v695, %v1284
    %1288 = vmatprep.subr.mxu0 %v144
    %1289 = vmatpush1.msra.mxu0 %v143
    %1290 = vmatprep.subr.mxu0 %v146
    %1291 = vmatpush1.msra.mxu0 %v145
    %1292 = vmatprep.subr.mxu0 %v148
    %1293 = vmatpush1.msra.mxu0 %v147
    %1294 = vmatprep.subr.mxu0 %v150
    %1295 = vmatpush1.msra.mxu0 %v149
    %1296 = vmatprep.subr.mxu0 %v152
    %1297 = vmatpush1.msra.mxu0 %v151
    %1298 = vmatprep.subr.mxu0 %v154
    %1299 = vmatpush1.msra.mxu0 %v153
    %1300 = vmatprep.subr.mxu0 %v156
    %1301 = vmatpush1.msra.mxu0 %v155
    %1302 = vmatprep.subr.mxu0 %v158
    %1303 = vmatpush1.msra.mxu0 %v157
    %1304 = vmatprep.subr.mxu0 %v160
    %1305 = vmatpush1.msra.mxu0 %v159
    %1306 = vmatprep.subr.mxu0 %v162
    %1307 = vmatpush1.msra.mxu0 %v161
    %1308 = vmatprep.subr.mxu0 %v164
    %1309 = vmatpush1.msra.mxu0 %v163
    %1310 = vmatprep.subr.mxu0 %v166
    %1311 = vmatpush1.msra.mxu0 %v165
    %1312 = vmatprep.subr.mxu0 %v168
    %1313 = vmatpush1.msra.mxu0 %v167
    %1314 = vmatprep.subr.mxu0 %v170
    %1315 = vmatpush1.msra.mxu0 %v169
    %1316 = vmatprep.subr.mxu0 %v172
    %1317 = vmatpush1.msra.mxu0 %v171
    %1318 = vmatprep.subr.mxu0 %v174
    %1319 = vmatpush1.msra.mxu0 %v173
    %1320 = vmatprep.subr.mxu0 %v176
    %1321 = vmatpush1.msra.mxu0 %v175
    %1322 = vmatprep.subr.mxu0 %v178
    %1323 = vmatpush1.msra.mxu0 %v177
    %1324 = vmatprep.subr.mxu0 %v180
    %1325 = vmatpush1.msra.mxu0 %v179
    %1326 = vmatprep.subr.mxu0 %v182
    %1327 = vmatpush1.msra.mxu0 %v181
    %1328 = vmatprep.subr.mxu0 %v184
    %1329 = vmatpush1.msra.mxu0 %v183
    %1330 = vmatprep.subr.mxu0 %v186
    %1331 = vmatpush1.msra.mxu0 %v185
    %1332 = vmatprep.subr.mxu0 %v188
    %1333 = vmatpush1.msra.mxu0 %v187
    %1334 = vmatprep.subr.mxu0 %v190
    %1335 = vmatpush1.msra.mxu0 %v189
    %1336 = vmatprep.subr.mxu0 %v192
    %1337 = vmatpush1.msra.mxu0 %v191
    %1338 = vmatprep.subr.mxu0 %v194
    %1339 = vmatpush1.msra.mxu0 %v193
    %1340 = vmatprep.subr.mxu0 %v196
    %1341 = vmatpush1.msra.mxu0 %v195
    %1342 = vmatprep.subr.mxu0 %v198
    %1343 = vmatpush1.msra.mxu0 %v197
    %1344 = vmatprep.subr.mxu0 %v200
    %1345 = vmatpush1.msra.mxu0 %v199
    %1346 = vmatprep.subr.mxu0 %v202
    %1347 = vmatpush1.msra.mxu0 %v201
    %1348 = vmatprep.subr.mxu0 %v204
    %1349 = vmatpush1.msra.mxu0 %v203
    %1350 = vmatprep.subr.mxu0 %v206
    %1351 = vmatpush1.msra.mxu0 %v205
    %1352 = vmatprep.mubr.f32.mxu0 %v1287
    %1353 = vmatmul.mubr.f32.gmra.mrb[0].mxu0 %v1286
    %v1354 = vpop.f32.mrb[0].mxu0
    %v1355 = vadd.f32 0.0, %v1354
    %v1356 = vpop.f32.mrb[0].mxu0
    %v1357 = vadd.f32 0.0, %v1356
    %1358 = vdwg.mxu0
    %vm1359 = vcmp.ne.f32.partialorder %v1355, 0.0
    %vm1360 = vcmp.ne.f32.partialorder %v1357, 0.0
    %v1361 = vsel %vm1359, 1, 0
    %v1362 = vsel %vm1360, 1, 0
    %v1363 = vcvt.s32.f32 %v1361
    %v1364 = vcvt.s32.f32 %v1362
    %v1365 = vadd.f32 %v1363, %v1364
    %1366 = vadd.xlane.f32.xlu0 %v1365
    %v1367 = vpop.xlane.xlu0 %1366
    %v1368 = vadd.f32 %v1286, %v1287
    %1369 = vadd.xlane.f32.xlu0 %v1368
    %v1370 = vpop.xlane.xlu0 %1369
    %v1371 = vrcp.pop %v1367
    %v1372 = vmul.f32 %v1370, %v1371
    %v1373 = vsub.f32 %v1286, %v1372
    %v1374 = vsub.f32 %v1287, %v1372
    %v1375 = vmul.f32 %v1373, %v1363
    %v1376 = vmul.f32 %v1374, %v1364
    %v1377 = vmul.f32 %v1375, %v1375
    %v1378 = vmul.f32 %v1376, %v1376
    %v1379 = vadd.f32 %v1377, 1e-05
    %v1380 = vadd.f32 %v1378, 1e-05
    %v1381 = vrsqrt.pop %v1379
    %v1382 = vmul.f32 %v1379, %v1381
    %vm1383 = vcmp.eq.f32.partialorder %v1379, inf
    %v1384 = vsel %vm1383, %v1379, %v1382
    %vm1385 = vcmp.eq.f32.partialorder %v1379, 0.0
    %v1386 = vand.u32 %v1379, 2147483648
    %v1387 = vsel %vm1385, %v1386, %v1384
    %v1388 = vrsqrt.pop %v1380
    %v1389 = vmul.f32 %v1380, %v1388
    %vm1390 = vcmp.eq.f32.partialorder %v1380, inf
    %v1391 = vsel %vm1390, %v1380, %v1389
    %vm1392 = vcmp.eq.f32.partialorder %v1380, 0.0
    %v1393 = vand.u32 %v1380, 2147483648
    %v1394 = vsel %vm1392, %v1393, %v1391
    %v1395 = vrcp.pop %v1387
    %v1396 = vmul.f32 %v1375, %v1395
    %v1397 = vrcp.pop %v1394
    %v1398 = vmul.f32 %v1376, %v1397
    %v1399 = vlaneseq
    %v1400 = vshrl.u32 %v1399, 7
    %v1401 = vsub.s32 5, %v1400
    %v1402 = vrot.slane %v207, %v1401
    %v1403 = vlaneseq
    %v1404 = vshrl.u32 %v1403, 7
    %v1405 = vsub.s32 5, %v1404
    %v1406 = vrot.slane %v208, %v1405
    %v1407 = vmul.f32 %v1396, %v1402
    %v1408 = vmul.f32 %v1398, %v1406
    %v1409 = vlaneseq
    %v1410 = vshrl.u32 %v1409, 7
    %v1411 = vsub.s32 6, %v1410
    %v1412 = vrot.slane %v207, %v1411
    %v1413 = vlaneseq
    %v1414 = vshrl.u32 %v1413, 7
    %v1415 = vsub.s32 6, %v1414
    %v1416 = vrot.slane %v208, %v1415
    %v1417 = vadd.f32 %v1407, %v1412
    %v1418 = vadd.f32 %v1408, %v1416
    %1419 = vmatprep.subr.mxu0 %v144
    %1420 = vmatpush1.msra.mxu0 %v143
    %1421 = vmatprep.subr.mxu0 %v146
    %1422 = vmatpush1.msra.mxu0 %v145
    %1423 = vmatprep.subr.mxu0 %v148
    %1424 = vmatpush1.msra.mxu0 %v147
    %1425 = vmatprep.subr.mxu0 %v150
    %1426 = vmatpush1.msra.mxu0 %v149
    %1427 = vmatprep.subr.mxu0 %v152
    %1428 = vmatpush1.msra.mxu0 %v151
    %1429 = vmatprep.subr.mxu0 %v154
    %1430 = vmatpush1.msra.mxu0 %v153
    %1431 = vmatprep.subr.mxu0 %v156
    %1432 = vmatpush1.msra.mxu0 %v155
    %1433 = vmatprep.subr.mxu0 %v158
    %1434 = vmatpush1.msra.mxu0 %v157
    %1435 = vmatprep.subr.mxu0 %v160
    %1436 = vmatpush1.msra.mxu0 %v159
    %1437 = vmatprep.subr.mxu0 %v162
    %1438 = vmatpush1.msra.mxu0 %v161
    %1439 = vmatprep.subr.mxu0 %v164
    %1440 = vmatpush1.msra.mxu0 %v163
    %1441 = vmatprep.subr.mxu0 %v166
    %1442 = vmatpush1.msra.mxu0 %v165
    %1443 = vmatprep.subr.mxu0 %v168
    %1444 = vmatpush1.msra.mxu0 %v167
    %1445 = vmatprep.subr.mxu0 %v170
    %1446 = vmatpush1.msra.mxu0 %v169
    %1447 = vmatprep.subr.mxu0 %v172
    %1448 = vmatpush1.msra.mxu0 %v171
    %1449 = vmatprep.subr.mxu0 %v174
    %1450 = vmatpush1.msra.mxu0 %v173
    %1451 = vmatprep.subr.mxu0 %v176
    %1452 = vmatpush1.msra.mxu0 %v175
    %1453 = vmatprep.subr.mxu0 %v178
    %1454 = vmatpush1.msra.mxu0 %v177
    %1455 = vmatprep.subr.mxu0 %v180
    %1456 = vmatpush1.msra.mxu0 %v179
    %1457 = vmatprep.subr.mxu0 %v182
    %1458 = vmatpush1.msra.mxu0 %v181
    %1459 = vmatprep.subr.mxu0 %v184
    %1460 = vmatpush1.msra.mxu0 %v183
    %1461 = vmatprep.subr.mxu0 %v186
    %1462 = vmatpush1.msra.mxu0 %v185
    %1463 = vmatprep.subr.mxu0 %v188
    %1464 = vmatpush1.msra.mxu0 %v187
    %1465 = vmatprep.subr.mxu0 %v190
    %1466 = vmatpush1.msra.mxu0 %v189
    %1467 = vmatprep.subr.mxu0 %v192
    %1468 = vmatpush1.msra.mxu0 %v191
    %1469 = vmatprep.subr.mxu0 %v194
    %1470 = vmatpush1.msra.mxu0 %v193
    %1471 = vmatprep.subr.mxu0 %v196
    %1472 = vmatpush1.msra.mxu0 %v195
    %1473 = vmatprep.subr.mxu0 %v198
    %1474 = vmatpush1.msra.mxu0 %v197
    %1475 = vmatprep.subr.mxu0 %v200
    %1476 = vmatpush1.msra.mxu0 %v199
    %1477 = vmatprep.subr.mxu0 %v202
    %1478 = vmatpush1.msra.mxu0 %v201
    %1479 = vmatprep.subr.mxu0 %v204
    %1480 = vmatpush1.msra.mxu0 %v203
    %1481 = vmatprep.subr.mxu0 %v206
    %1482 = vmatpush1.msra.mxu0 %v205
    %1483 = vmatprep.mubr.f32.mxu0 %v1418
    %1484 = vmatmul.mubr.f32.gmra.mrb[0].mxu0 %v1417
    %v1485 = vpop.f32.mrb[0].mxu0
    %v1486 = vadd.f32 0.0, %v1485
    %v1487 = vpop.f32.mrb[0].mxu0
    %v1488 = vadd.f32 0.0, %v1487
    %1489 = vdwg.mxu0
    %vm1490 = vcmp.ne.f32.partialorder %v1486, 0.0
    %vm1491 = vcmp.ne.f32.partialorder %v1488, 0.0
    %v1492 = vsel %vm1490, 1, 0
    %v1493 = vsel %vm1491, 1, 0
    %v1494 = vcvt.s32.f32 %v1492
    %v1495 = vcvt.s32.f32 %v1493
    %v1496 = vadd.f32 %v1494, %v1495
    %1497 = vadd.xlane.f32.xlu0 %v1496
    %v1498 = vpop.xlane.xlu0 %1497
    %v1499 = vmul.f32 %v1498, 0.03125
    %v1500 = vld [vmem:[#allocation13] sm:$0xff]
    %v1501 = vld [vmem:[#allocation13 + $0x8] sm:$0xff]
    %v1502 = vld [vmem:[#allocation13 + $0x10] sm:$0xff]
    %v1503 = vld [vmem:[#allocation13 + $0x18] sm:$0xff]
    %v1504 = vld [vmem:[#allocation13 + $0x20] sm:$0xff]
    %v1505 = vld [vmem:[#allocation13 + $0x28] sm:$0xff]
    %v1506 = vld [vmem:[#allocation13 + $0x30] sm:$0xff]
    %v1507 = vld [vmem:[#allocation13 + $0x38] sm:$0xff]
    %v1508 = vld [vmem:[#allocation13 + $0x40] sm:$0xff]
    %v1509 = vld [vmem:[#allocation13 + $0x48] sm:$0xff]
    %v1510 = vld [vmem:[#allocation13 + $0x50] sm:$0xff]
    %v1511 = vld [vmem:[#allocation13 + $0x58] sm:$0xff]
    %v1512 = vld [vmem:[#allocation13 + $0x60] sm:$0xff]
    %v1513 = vld [vmem:[#allocation13 + $0x68] sm:$0xff]
    %v1514 = vld [vmem:[#allocation13 + $0x70] sm:$0xff]
    %v1515 = vld [vmem:[#allocation13 + $0x78] sm:$0xff]
    %v1516 = vld [vmem:[#allocation13 + $0x80] sm:$0xff]
    %v1517 = vld [vmem:[#allocation13 + $0x88] sm:$0xff]
    %v1518 = vld [vmem:[#allocation13 + $0x90] sm:$0xff]
    %v1519 = vld [vmem:[#allocation13 + $0x98] sm:$0xff]
    %v1520 = vld [vmem:[#allocation13 + $0xa0] sm:$0xff]
    %v1521 = vld [vmem:[#allocation13 + $0xa8] sm:$0xff]
    %v1522 = vld [vmem:[#allocation13 + $0xb0] sm:$0xff]
    %v1523 = vld [vmem:[#allocation13 + $0xb8] sm:$0xff]
    %v1524 = vld [vmem:[#allocation13 + $0xc0] sm:$0xff]
    %v1525 = vld [vmem:[#allocation13 + $0xc8] sm:$0xff]
    %v1526 = vld [vmem:[#allocation13 + $0xd0] sm:$0xff]
    %v1527 = vld [vmem:[#allocation13 + $0xd8] sm:$0xff]
    %v1528 = vld [vmem:[#allocation13 + $0xe0] sm:$0xff]
    %v1529 = vld [vmem:[#allocation13 + $0xe8] sm:$0xff]
    %v1530 = vld [vmem:[#allocation13 + $0xf0] sm:$0xff]
    %v1531 = vld [vmem:[#allocation13 + $0xf8] sm:$0xff]
    %1532 = vmatprep.subr.mxu0 0.0
    %1533 = vmatpush1.msra.mxu0 %v1500
    %1534 = vmatprep.subr.mxu0 0.0
    %1535 = vmatpush1.msra.mxu0 %v1501
    %1536 = vmatprep.subr.mxu0 0.0
    %1537 = vmatpush1.msra.mxu0 %v1502
    %1538 = vmatprep.subr.mxu0 0.0
    %1539 = vmatpush1.msra.mxu0 %v1503
    %1540 = vmatprep.subr.mxu0 0.0
    %1541 = vmatpush1.msra.mxu0 %v1504
    %1542 = vmatprep.subr.mxu0 0.0
    %1543 = vmatpush1.msra.mxu0 %v1505
    %1544 = vmatprep.subr.mxu0 0.0
    %1545 = vmatpush1.msra.mxu0 %v1506
    %1546 = vmatprep.subr.mxu0 0.0
    %1547 = vmatpush1.msra.mxu0 %v1507
    %1548 = vmatprep.subr.mxu0 0.0
    %1549 = vmatpush1.msra.mxu0 %v1508
    %1550 = vmatprep.subr.mxu0 0.0
    %1551 = vmatpush1.msra.mxu0 %v1509
    %1552 = vmatprep.subr.mxu0 0.0
    %1553 = vmatpush1.msra.mxu0 %v1510
    %1554 = vmatprep.subr.mxu0 0.0
    %1555 = vmatpush1.msra.mxu0 %v1511
    %1556 = vmatprep.subr.mxu0 0.0
    %1557 = vmatpush1.msra.mxu0 %v1512
    %1558 = vmatprep.subr.mxu0 0.0
    %1559 = vmatpush1.msra.mxu0 %v1513
    %1560 = vmatprep.subr.mxu0 0.0
    %1561 = vmatpush1.msra.mxu0 %v1514
    %1562 = vmatprep.subr.mxu0 0.0
    %1563 = vmatpush1.msra.mxu0 %v1515
    %1564 = vmatprep.subr.mxu0 0.0
    %1565 = vmatpush1.msra.mxu0 %v1516
    %1566 = vmatprep.subr.mxu0 0.0
    %1567 = vmatpush1.msra.mxu0 %v1517
    %1568 = vmatprep.subr.mxu0 0.0
    %1569 = vmatpush1.msra.mxu0 %v1518
    %1570 = vmatprep.subr.mxu0 0.0
    %1571 = vmatpush1.msra.mxu0 %v1519
    %1572 = vmatprep.subr.mxu0 0.0
    %1573 = vmatpush1.msra.mxu0 %v1520
    %1574 = vmatprep.subr.mxu0 0.0
    %1575 = vmatpush1.msra.mxu0 %v1521
    %1576 = vmatprep.subr.mxu0 0.0
    %1577 = vmatpush1.msra.mxu0 %v1522
    %1578 = vmatprep.subr.mxu0 0.0
    %1579 = vmatpush1.msra.mxu0 %v1523
    %1580 = vmatprep.subr.mxu0 0.0
    %1581 = vmatpush1.msra.mxu0 %v1524
    %1582 = vmatprep.subr.mxu0 0.0
    %1583 = vmatpush1.msra.mxu0 %v1525
    %1584 = vmatprep.subr.mxu0 0.0
    %1585 = vmatpush1.msra.mxu0 %v1526
    %1586 = vmatprep.subr.mxu0 0.0
    %1587 = vmatpush1.msra.mxu0 %v1527
    %1588 = vmatprep.subr.mxu0 0.0
    %1589 = vmatpush1.msra.mxu0 %v1528
    %1590 = vmatprep.subr.mxu0 0.0
    %1591 = vmatpush1.msra.mxu0 %v1529
    %1592 = vmatprep.subr.mxu0 0.0
    %1593 = vmatpush1.msra.mxu0 %v1530
    %1594 = vmatprep.subr.mxu0 0.0
    %1595 = vmatpush1.msra.mxu0 %v1531
    %1596 = vmatprep.mubr.f32.mxu0 %v1418
    %1597 = vmatmul.mubr.f32.gmra.mrb[0].mxu0 %v1417
    %v1598 = vpop.f32.mrb[0].mxu0
    %v1599 = vadd.f32 0.0, %v1598
    %v1600 = vpop.f32.mrb[0].mxu0
    %1601 = vdwg.mxu0
    %v1602 = vrcp.pop %v1499
    %v1603 = vmul.f32 %v1599, %v1602
    %v1604 = vlaneseq
    %v1605 = vshrl.u32 %v1604, 7
    %v1606 = vsub.s32 0, %v1605
    %v1607 = vrot.slane %v209, %v1606
    %v1608 = vadd.f32 %v1603, %v1607
    %v1609 = vmul.f32 %v1608, 0.5
    %v1610 = vmul.f32 %v1608, 0.70710677
    %v1611 = verf.f32.pop %v1610
    %v1612 = vadd.f32 %v1611, 1.0
    %v1613 = vmul.f32 %v1609, %v1612
    %v1614 = vld [vmem:[#allocation14] sm:$0xff]
    %v1615 = vld [vmem:[#allocation14 + $0x8] sm:$0xff]
    %v1616 = vld [vmem:[#allocation14 + $0x10] sm:$0xff]
    %v1617 = vld [vmem:[#allocation14 + $0x18] sm:$0xff]
    %v1618 = vld [vmem:[#allocation14 + $0x20] sm:$0xff]
    %v1619 = vld [vmem:[#allocation14 + $0x28] sm:$0xff]
    %v1620 = vld [vmem:[#allocation14 + $0x30] sm:$0xff]
    %v1621 = vld [vmem:[#allocation14 + $0x38] sm:$0xff]
    %v1622 = vld [vmem:[#allocation14 + $0x40] sm:$0xff]
    %v1623 = vld [vmem:[#allocation14 + $0x48] sm:$0xff]
    %v1624 = vld [vmem:[#allocation14 + $0x50] sm:$0xff]
    %v1625 = vld [vmem:[#allocation14 + $0x58] sm:$0xff]
    %v1626 = vld [vmem:[#allocation14 + $0x60] sm:$0xff]
    %v1627 = vld [vmem:[#allocation14 + $0x68] sm:$0xff]
    %v1628 = vld [vmem:[#allocation14 + $0x70] sm:$0xff]
    %v1629 = vld [vmem:[#allocation14 + $0x78] sm:$0xff]
    %v1630 = vlaneseq
    %v1631 = vshrl.u32 %v1630, 7
    %v1632 = vsub.s32 1, %v1631
    %v1633 = vrot.slane %v209, %v1632
    %1634 = vmatprep.subr.mxu0 0.0
    %1635 = vmatpush1.msra.mxu0 %v1614
    %1636 = vmatprep.subr.mxu0 0.0
    %1637 = vmatpush1.msra.mxu0 %v1615
    %1638 = vmatprep.subr.mxu0 0.0
    %1639 = vmatpush1.msra.mxu0 %v1616
    %1640 = vmatprep.subr.mxu0 0.0
    %1641 = vmatpush1.msra.mxu0 %v1617
    %1642 = vmatprep.subr.mxu0 0.0
    %1643 = vmatpush1.msra.mxu0 %v1618
    %1644 = vmatprep.subr.mxu0 0.0
    %1645 = vmatpush1.msra.mxu0 %v1619
    %1646 = vmatprep.subr.mxu0 0.0
    %1647 = vmatpush1.msra.mxu0 %v1620
    %1648 = vmatprep.subr.mxu0 0.0
    %1649 = vmatpush1.msra.mxu0 %v1621
    %1650 = vmatprep.subr.mxu0 0.0
    %1651 = vmatpush1.msra.mxu0 %v1622
    %1652 = vmatprep.subr.mxu0 0.0
    %1653 = vmatpush1.msra.mxu0 %v1623
    %1654 = vmatprep.subr.mxu0 0.0
    %1655 = vmatpush1.msra.mxu0 %v1624
    %1656 = vmatprep.subr.mxu0 0.0
    %1657 = vmatpush1.msra.mxu0 %v1625
    %1658 = vmatprep.subr.mxu0 0.0
    %1659 = vmatpush1.msra.mxu0 %v1626
    %1660 = vmatprep.subr.mxu0 0.0
    %1661 = vmatpush1.msra.mxu0 %v1627
    %1662 = vmatprep.subr.mxu0 0.0
    %1663 = vmatpush1.msra.mxu0 %v1628
    %1664 = vmatprep.subr.mxu0 0.0
    %1665 = vmatpush1.msra.mxu0 %v1629
    %1666 = vmatprep.subr.mxu0 0.0
    %1667 = vmatpush1.msra.mxu0 0.0
    %1668 = vmatprep.subr.mxu0 0.0
    %1669 = vmatpush1.msra.mxu0 0.0
    %1670 = vmatprep.subr.mxu0 0.0
    %1671 = vmatpush1.msra.mxu0 0.0
    %1672 = vmatprep.subr.mxu0 0.0
    %1673 = vmatpush1.msra.mxu0 0.0
    %1674 = vmatprep.subr.mxu0 0.0
    %1675 = vmatpush1.msra.mxu0 0.0
    %1676 = vmatprep.subr.mxu0 0.0
    %1677 = vmatpush1.msra.mxu0 0.0
    %1678 = vmatprep.subr.mxu0 0.0
    %1679 = vmatpush1.msra.mxu0 0.0
    %1680 = vmatprep.subr.mxu0 0.0
    %1681 = vmatpush1.msra.mxu0 0.0
    %1682 = vmatprep.subr.mxu0 0.0
    %1683 = vmatpush1.msra.mxu0 0.0
    %1684 = vmatprep.subr.mxu0 0.0
    %1685 = vmatpush1.msra.mxu0 0.0
    %1686 = vmatprep.subr.mxu0 0.0
    %1687 = vmatpush1.msra.mxu0 0.0
    %1688 = vmatprep.subr.mxu0 0.0
    %1689 = vmatpush1.msra.mxu0 0.0
    %1690 = vmatprep.subr.mxu0 0.0
    %1691 = vmatpush1.msra.mxu0 0.0
    %1692 = vmatprep.subr.mxu0 0.0
    %1693 = vmatpush1.msra.mxu0 0.0
    %1694 = vmatprep.subr.mxu0 0.0
    %1695 = vmatpush1.msra.mxu0 0.0
    %1696 = vmatprep.subr.mxu0 0.0
    %1697 = vmatpush1.msra.mxu0 0.0
    %1698 = vmatprep.mubr.f32.mxu0 0.0
    %1699 = vmatmul.mubr.f32.gmra.mrb[0].mxu0 %v1613
    %v1700 = vpop.f32.mrb[0].mxu0
    %v1701 = vadd.f32 %v1633, %v1700
    %v1702 = vpop.f32.mrb[0].mxu0
    %1703 = vdwg.mxu0
    %1704 = vmax.xlane.f32.xlu0 %v1701
    %v1705 = vpop.xlane.xlu0 %1704
    %v1706 = vsub.f32 %v1701, %v1705
    %v1707 = vmul.f32 %v1706, 1.442695
    %v1708 = vpow.pop %v1707
    %1709 = vadd.xlane.f32.xlu0 %v1708
    %v1710 = vpop.xlane.xlu0 %1709
    %v1711 = vrcp.pop %v1710
    %v1712 = vmul.f32 %v1708, %v1711
    %1713 = vst [vmem:[#allocation16] sm:$0xff] %v1712
    // Predicated region
    $region74: #{tpu_custom_call.1} parent=1 // pred_check
      _
    $region75: #{tpu_custom_call.1} parent=1 // pred_check_branch
      %1715 = sbr.rel (0) target = $region77
    $region76: #{tpu_custom_call.1} parent=1 // pred_region
      %s1717 = ssub.s32 128, 128
      %1718 = vsyncadd [#allocation4], %s1717
      %s1720 = sshll.u32 [#allocation16], 4
      %s1721 = int_to_ptr.vmem [resolvable:$true] %s1720
      %1723 = dma.vmem_to_hbm [thread:$0]  %s1721, 128, %s10, [#allocation4]
    $region77: #{tpu_custom_call.1} parent=1 // pred_fallthru
      _
    // Predicated region
    $region78: #{tpu_custom_call.1} parent=1 // pred_check
      _
    $region79: #{tpu_custom_call.1} parent=1 // pred_check_branch
      %1725 = sbr.rel (0) target = $region81
    $region80: #{tpu_custom_call.1} parent=1 // pred_region
      %1726 = dma.done [#allocation4], 128
    $region81: #{tpu_custom_call.1} parent=1 // pred_fallthru
      _
    %1727 = vsyncpa [#allocation3], 1
    %1728 = vsyncpa [#allocation6], 1
    %1729 = vsyncpa [#allocation9], 1
    %1730 = vsyncpa [#allocation12], 1
    %1731 = vsyncpa [#allocation15], 1
    %1732 = vsyncpa [#allocation4], 1

</llo_original>
